<compile_context>
chip_gen: v6e
topology: v6e:2x2x1
jax: 0.10.0
libtpu: 0.0.40
codegen_flags: <defaults>
</compile_context>

<pallas_src>
import jax
import jax.numpy as jnp
import numpy as np
from jax.experimental import pallas as pl
from jax.experimental.pallas import tpu as pltpu

# ---- small, lane/sublane friendly shapes ------------------------------------
B = 8          # batch of (h, r) queries
NE = 256       # num_entities
NR = 32        # num_relations
DE = 128       # entity_dim
DR = 16        # relation_dim

_BN_EPS = 1e-5
_PRELU_A = 0.25

# ---- Wcat pipelining over its (DR*DE) contraction axis ----------------------
# 2 chunks: 512 KiB bf16 weights per step.  Good compromise for v5e/v6e/v7x
# (review: 1-2 chunks v7x, 2 chunks v6e, 2-4 chunks v5e).
N_CHUNKS = 2
KREL = DR // N_CHUNKS          # relations handled per grid step (8)
KCH = KREL * DE                # contraction rows of Wcat per grid step (1024)


def tucker_kernel(ha_ref, hb_ref, ra_ref, rb_ref, wcat_ref,
                  eat_ref, ebt_ref, b1_ref, b2_ref,
                  ya_ref, yb_ref, acc_ref):
    c = pl.program_id(0)

    @pl.when(c == 0)
    def _init():
        acc_ref[...] = jnp.zeros_like(acc_ref)

    # Build this step's (2B, KCH) slab of X = [U; V] from tiny VPU outer products.
    #   U[b, k*DE+i] = ra[b,k]*ha[b,i] - rb[b,k]*hb[b,i]
    #   V[b, k*DE+i] = ra[b,k]*hb[b,i] + rb[b,k]*ha[b,i]
    h_a = ha_ref[...]                      # (B, DE)
    h_b = hb_ref[...]
    r_a = ra_ref[0]                        # (B, KREL) -- this chunk's relation columns
    r_b = rb_ref[0]
    u_blocks, v_blocks = [], []
    for kk in range(KREL):                 # static loop: 1-vreg VPU outer products
        ra_k = r_a[:, kk:kk + 1]
        rb_k = r_b[:, kk:kk + 1]
        u_blocks.append(ra_k * h_a - rb_k * h_b)
        v_blocks.append(ra_k * h_b + rb_k * h_a)
    u = jnp.concatenate(u_blocks, axis=1)  # (B, KCH)
    v = jnp.concatenate(v_blocks, axis=1)
    x = jnp.concatenate([u, v], axis=0).astype(wcat_ref.dtype)   # (2B, KCH) bf16

    # One well-shaped, full-width MXU matmul per step: (2B, KCH) @ (KCH, 2*DE),
    # bf16 operands, f32 accumulation in VMEM scratch.
    acc_ref[...] += jnp.dot(x, wcat_ref[...], preferred_element_type=jnp.float32)

    @pl.when(c == pl.num_programs(0) - 1)
    def _finalize():
        acc = acc_ref[...]                             # (2B, 2*DE); BN scales folded into Wcat
        ua = acc[0:B, 0:DE]          # U @ Wa
        ub = acc[0:B, DE:2 * DE]     # U @ Wb
        va = acc[B:2 * B, 0:DE]      # V @ Wa
        vb = acc[B:2 * B, DE:2 * DE] # V @ Wb
        t_a = ua - vb
        t_b = va + ub
        t_a = jnp.where(t_a > 0, t_a, _PRELU_A * t_a)  # PReLU (default a = 0.25), f32
        t_b = jnp.where(t_b > 0, t_b, _PRELU_A * t_b)
        # ComplexScoringAll: (B,DE)@(DE,NE) matmuls, lane-dense (B,NE) stores.
        score_a = jnp.dot(t_a, eat_ref[...],
                          preferred_element_type=jnp.float32) + b1_ref[...]
        score_b = jnp.dot(t_b, ebt_ref[...],
                          preferred_element_type=jnp.float32) + b2_ref[...]
        ya_ref[...] = jax.nn.sigmoid(score_a)
        yb_ref[...] = jax.nn.sigmoid(score_b)


def prepare_params(params):
    """One-time repack: Wcat = [Wa | Wb] along the output axis (full 256-lane MXU RHS),
    eval-mode BatchNorm scales folded in, cast to bf16; entity tables pre-transposed."""
    inv_bn = 1.0 / np.sqrt(1.0 + _BN_EPS)
    scale = jnp.float32(inv_bn ** 3)                   # bn0/bn1 * bn3/bn4 * bn5/bn6
    wa = params["Wa"].reshape(DR * DE, DE)             # rows = k*DE + i
    wb = params["Wb"].reshape(DR * DE, DE)
    wcat = (jnp.concatenate([wa, wb], axis=1) * scale).astype(jnp.bfloat16)  # (DR*DE, 2*DE)
    return {
        "Wcat": wcat,
        "E_aT": params["E_a"].T,                       # (DE, NE), f32 for scoring accuracy
        "E_bT": params["E_b"].T,
        "b1": params["b1"].reshape(1, NE),
        "b2": params["b2"].reshape(1, NE),
    }


def tucker_forward(h_idx, r_idx, params, prep):
    # Embedding row gathers (8 rows, ~9 KB) stay in plain JAX; all other work is in-kernel.
    h_a = params["E_a"][h_idx]
    h_b = params["E_b"][h_idx]
    r_a = params["R_a"][r_idx]                         # (B, DR)
    r_b = params["R_b"][r_idx]
    # Pre-split relations per K-chunk: (N_CHUNKS, B, KREL), [c, b, kk] = r[b, c*KREL+kk].
    r_a_ch = r_a.reshape(B, N_CHUNKS, KREL).transpose(1, 0, 2)
    r_b_ch = r_b.reshape(B, N_CHUNKS, KREL).transpose(1, 0, 2)

    def const2d(shape):
        return pl.BlockSpec(shape, lambda c: (0, 0))

    grid_spec = pltpu.PrefetchScalarGridSpec(
        num_scalar_prefetch=0,
        grid=(N_CHUNKS,),
        in_specs=[
            const2d((B, DE)), const2d((B, DE)),                    # h_a, h_b
            pl.BlockSpec((1, B, KREL), lambda c: (c, 0, 0)),       # r_a chunk
            pl.BlockSpec((1, B, KREL), lambda c: (c, 0, 0)),       # r_b chunk
            pl.BlockSpec((KCH, 2 * DE), lambda c: (c, 0)),         # Wcat: pipelined over K
            const2d((DE, NE)), const2d((DE, NE)),                  # E_aT, E_bT
            const2d((1, NE)), const2d((1, NE)),                    # b1, b2
        ],
        out_specs=(const2d((B, NE)), const2d((B, NE))),
        scratch_shapes=[
            pltpu.VMEM((2 * B, 2 * DE), jnp.float32),              # [U;V]@[Wa|Wb] accumulator
        ],
    )
    y_a, y_b = pl.pallas_call(
        tucker_kernel,
        out_shape=(jax.ShapeDtypeStruct((B, NE), jnp.float32),
                   jax.ShapeDtypeStruct((B, NE), jnp.float32)),
        grid_spec=grid_spec,
        compiler_params=pltpu.CompilerParams(
            # Reduction axis with carried scratch accumulator: must stay sequential.
            dimension_semantics=("arbitrary",)),
    )(h_a, h_b, r_a_ch, r_b_ch, prep["Wcat"],
      prep["E_aT"], prep["E_bT"], prep["b1"], prep["b2"])
    return y_a, y_b


def reference_forward(h_idx, r_idx, params):
    """Pure-JAX f32 mirror of the PyTorch forward (eval mode) for verification."""
    bn = lambda x: x / jnp.sqrt(1.0 + _BN_EPS)
    prelu = lambda x: jnp.where(x > 0, x, _PRELU_A * x)

    h_a = bn(params["E_a"][h_idx]); h_b = bn(params["E_b"][h_idx])
    r_a = bn(params["R_a"][r_idx]); r_b = bn(params["R_b"][r_idx])

    def core(W, h, r):
        Wr = (r @ W.reshape(DR, DE * DE)).reshape(-1, DE, DE)
        return jnp.einsum("bi,bij->bj", h, Wr)

    Wa, Wb = params["Wa"], params["Wb"]
    t_a = core(Wa, h_a, r_a) - core(Wb, h_a, r_b) - core(Wb, h_b, r_a) - core(Wa, h_b, r_b)
    t_b = core(Wb, h_a, r_a) + core(Wa, h_a, r_b) + core(Wa, h_b, r_a) - core(Wb, h_b, r_b)
    t_a = prelu(bn(t_a))
    t_b = prelu(bn(t_b))
    s_a = t_a @ params["E_a"].T + params["b1"].reshape(1, NE)
    s_b = t_b @ params["E_b"].T + params["b2"].reshape(1, NE)
    return jax.nn.sigmoid(s_a), jax.nn.sigmoid(s_b)


def make_params(key):
    ks = jax.random.split(key, 6)
    return {
        # ComplexEmbedding tables (deterministic synthetic init)
        "E_a": (0.1 * jax.random.normal(ks[0], (NE, DE))).astype(jnp.float32),
        "E_b": (0.1 * jax.random.normal(ks[1], (NE, DE))).astype(jnp.float32),
        "R_a": (0.1 * jax.random.normal(ks[2], (NR, DR))).astype(jnp.float32),
        "R_b": (0.1 * jax.random.normal(ks[3], (NR, DR))).astype(jnp.float32),
        # CoreTuckER.W ~ U(-0.01, 0.01), shape (DR, DE, DE)
        "Wa": jax.random.uniform(ks[4], (DR, DE, DE), jnp.float32, -0.01, 0.01),
        "Wb": jax.random.uniform(ks[5], (DR, DE, DE), jnp.float32, -0.01, 0.01),
        # biases b1, b2 initialized to zeros (as in the PyTorch module)
        "b1": jnp.zeros((NE,), jnp.float32),
        "b2": jnp.zeros((NE,), jnp.float32),
    }


if __name__ == "__main__":
    key = jax.random.PRNGKey(0)
    kp, kh, kr = jax.random.split(key, 3)
    params = make_params(kp)
    prep = prepare_params(params)

    h_idx = jax.random.randint(kh, (B,), 0, NE)
    r_idx = jax.random.randint(kr, (B,), 0, NR)

    y_a, y_b = tucker_forward(h_idx, r_idx, params, prep)
    jax.block_until_ready((y_a, y_b))

    ref_a, ref_b = reference_forward(h_idx, r_idx, params)
    # bf16 Wcat / bf16 X operands vs the f32 reference: sigmoid-output error is ~1e-5
    # at these magnitudes, so 1e-3 atol is comfortably safe.
    assert np.allclose(np.asarray(y_a), np.asarray(ref_a), atol=1e-3), "y_a mismatch"
    assert np.allclose(np.asarray(y_b), np.asarray(ref_b), atol=1e-3), "y_b mismatch"

    print("KERNEL_OK")
</pallas_src>

<mosaic_0001>
module attributes {stable_mosaic.version = 11 : i64} {
  func.func @tucker_kernel(%arg0: i32, %arg1: memref<8x128xf32, #tpu.memory_space<vmem>>, %arg2: memref<8x128xf32, #tpu.memory_space<vmem>>, %arg3: memref<1x8x8xf32, #tpu.memory_space<vmem>>, %arg4: memref<1x8x8xf32, #tpu.memory_space<vmem>>, %arg5: memref<1024x256xbf16, #tpu.memory_space<vmem>>, %arg6: memref<128x256xf32, #tpu.memory_space<vmem>>, %arg7: memref<128x256xf32, #tpu.memory_space<vmem>>, %arg8: memref<1x256xf32, #tpu.memory_space<vmem>>, %arg9: memref<1x256xf32, #tpu.memory_space<vmem>>, %arg10: memref<8x256xf32, #tpu.memory_space<vmem>>, %arg11: memref<8x256xf32, #tpu.memory_space<vmem>>, %arg12: memref<16x256xf32, #tpu.memory_space<vmem>>) attributes {dimension_semantics = [#tpu.dimension_semantics<arbitrary>], iteration_bounds = array<i64: 2>, scalar_prefetch = 0 : i64, scratch_operands = 1 : i64, tpu.core_type = #tpu.core_type<tc>, window_params = [{pipeline_mode = #tpu.pipeline_mode<synchronous>, transform_indices = @transform_0, window_bounds = array<i64: 8, 128>}, {pipeline_mode = #tpu.pipeline_mode<synchronous>, transform_indices = @transform_1, window_bounds = array<i64: 8, 128>}, {transform_indices = @transform_2, window_bounds = array<i64: 1, 8, 8>}, {transform_indices = @transform_3, window_bounds = array<i64: 1, 8, 8>}, {transform_indices = @transform_4, window_bounds = array<i64: 1024, 256>}, {pipeline_mode = #tpu.pipeline_mode<synchronous>, transform_indices = @transform_5, window_bounds = array<i64: 128, 256>}, {pipeline_mode = #tpu.pipeline_mode<synchronous>, transform_indices = @transform_6, window_bounds = array<i64: 128, 256>}, {pipeline_mode = #tpu.pipeline_mode<synchronous>, transform_indices = @transform_7, window_bounds = array<i64: 1, 256>}, {pipeline_mode = #tpu.pipeline_mode<synchronous>, transform_indices = @transform_8, window_bounds = array<i64: 1, 256>}, {pipeline_mode = #tpu.pipeline_mode<synchronous>, transform_indices = @transform_9, window_bounds = array<i64: 8, 256>}, {pipeline_mode = #tpu.pipeline_mode<synchronous>, transform_indices = @transform_10, window_bounds = array<i64: 8, 256>}]} {
    %c0_i32 = arith.constant 0 : i32
    %0 = arith.cmpi eq, %arg0, %c0_i32 : i32
    %1 = arith.extui %0 : i1 to i32
    %c0_i32_0 = arith.constant 0 : i32
    %2 = arith.cmpi ne, %1, %c0_i32_0 : i32
    scf.if %2 {
      %cst_17 = arith.constant 0.000000e+00 : f32
      %117 = vector.broadcast %cst_17 : f32 to vector<16x256xf32>
      %c0_18 = arith.constant 0 : index
      %c0_19 = arith.constant 0 : index
      %118 = vector.load %arg12[%c0_18, %c0_19] : memref<16x256xf32, #tpu.memory_space<vmem>>, vector<16x256xf32>
      tpu.vector_store %arg12[%c0_18, %c0_19], %117 {strides = array<i32>} : memref<16x256xf32, #tpu.memory_space<vmem>>, vector<16x256xf32>,
    } else {
    }
    %c0 = arith.constant 0 : index
    %c0_1 = arith.constant 0 : index
    %3 = vector.load %arg1[%c0, %c0_1] : memref<8x128xf32, #tpu.memory_space<vmem>>, vector<8x128xf32>
    %c0_2 = arith.constant 0 : index
    %c0_3 = arith.constant 0 : index
    %4 = vector.load %arg2[%c0_2, %c0_3] : memref<8x128xf32, #tpu.memory_space<vmem>>, vector<8x128xf32>
    %c0_4 = arith.constant 0 : index
    %c0_5 = arith.constant 0 : index
    %c0_6 = arith.constant 0 : index
    %5 = vector.load %arg3[%c0_4, %c0_5, %c0_6] : memref<1x8x8xf32, #tpu.memory_space<vmem>>, vector<1x8x8xf32>
    %6 = vector.shape_cast %5 : vector<1x8x8xf32> to vector<8x8xf32>
    %c0_7 = arith.constant 0 : index
    %c0_8 = arith.constant 0 : index
    %c0_9 = arith.constant 0 : index
    %7 = vector.load %arg4[%c0_7, %c0_8, %c0_9] : memref<1x8x8xf32, #tpu.memory_space<vmem>>, vector<1x8x8xf32>
    %8 = vector.shape_cast %7 : vector<1x8x8xf32> to vector<8x8xf32>
    %9 = vector.extract_strided_slice %6 {offsets = [0, 0], sizes = [8, 1], strides = [1, 1]} : vector<8x8xf32> to vector<8x1xf32>
    %10 = vector.extract_strided_slice %8 {offsets = [0, 0], sizes = [8, 1], strides = [1, 1]} : vector<8x8xf32> to vector<8x1xf32>
    %11 = vector.broadcast %9 : vector<8x1xf32> to vector<8x128xf32>
    %12 = arith.mulf %11, %3 : vector<8x128xf32>
    %13 = vector.broadcast %10 : vector<8x1xf32> to vector<8x128xf32>
    %14 = arith.mulf %13, %4 : vector<8x128xf32>
    %15 = arith.subf %12, %14 : vector<8x128xf32>
    %16 = vector.broadcast %9 : vector<8x1xf32> to vector<8x128xf32>
    %17 = arith.mulf %16, %4 : vector<8x128xf32>
    %18 = vector.broadcast %10 : vector<8x1xf32> to vector<8x128xf32>
    %19 = arith.mulf %18, %3 : vector<8x128xf32>
    %20 = arith.addf %17, %19 : vector<8x128xf32>
    %21 = vector.extract_strided_slice %6 {offsets = [0, 1], sizes = [8, 1], strides = [1, 1]} : vector<8x8xf32> to vector<8x1xf32>
    %22 = vector.extract_strided_slice %8 {offsets = [0, 1], sizes = [8, 1], strides = [1, 1]} : vector<8x8xf32> to vector<8x1xf32>
    %23 = vector.broadcast %21 : vector<8x1xf32> to vector<8x128xf32>
    %24 = arith.mulf %23, %3 : vector<8x128xf32>
    %25 = vector.broadcast %22 : vector<8x1xf32> to vector<8x128xf32>
    %26 = arith.mulf %25, %4 : vector<8x128xf32>
    %27 = arith.subf %24, %26 : vector<8x128xf32>
    %28 = vector.broadcast %21 : vector<8x1xf32> to vector<8x128xf32>
    %29 = arith.mulf %28, %4 : vector<8x128xf32>
    %30 = vector.broadcast %22 : vector<8x1xf32> to vector<8x128xf32>
    %31 = arith.mulf %30, %3 : vector<8x128xf32>
    %32 = arith.addf %29, %31 : vector<8x128xf32>
    %33 = vector.extract_strided_slice %6 {offsets = [0, 2], sizes = [8, 1], strides = [1, 1]} : vector<8x8xf32> to vector<8x1xf32>
    %34 = vector.extract_strided_slice %8 {offsets = [0, 2], sizes = [8, 1], strides = [1, 1]} : vector<8x8xf32> to vector<8x1xf32>
    %35 = vector.broadcast %33 : vector<8x1xf32> to vector<8x128xf32>
    %36 = arith.mulf %35, %3 : vector<8x128xf32>
    %37 = vector.broadcast %34 : vector<8x1xf32> to vector<8x128xf32>
    %38 = arith.mulf %37, %4 : vector<8x128xf32>
    %39 = arith.subf %36, %38 : vector<8x128xf32>
    %40 = vector.broadcast %33 : vector<8x1xf32> to vector<8x128xf32>
    %41 = arith.mulf %40, %4 : vector<8x128xf32>
    %42 = vector.broadcast %34 : vector<8x1xf32> to vector<8x128xf32>
    %43 = arith.mulf %42, %3 : vector<8x128xf32>
    %44 = arith.addf %41, %43 : vector<8x128xf32>
    %45 = vector.extract_strided_slice %6 {offsets = [0, 3], sizes = [8, 1], strides = [1, 1]} : vector<8x8xf32> to vector<8x1xf32>
    %46 = vector.extract_strided_slice %8 {offsets = [0, 3], sizes = [8, 1], strides = [1, 1]} : vector<8x8xf32> to vector<8x1xf32>
    %47 = vector.broadcast %45 : vector<8x1xf32> to vector<8x128xf32>
    %48 = arith.mulf %47, %3 : vector<8x128xf32>
    %49 = vector.broadcast %46 : vector<8x1xf32> to vector<8x128xf32>
    %50 = arith.mulf %49, %4 : vector<8x128xf32>
    %51 = arith.subf %48, %50 : vector<8x128xf32>
    %52 = vector.broadcast %45 : vector<8x1xf32> to vector<8x128xf32>
    %53 = arith.mulf %52, %4 : vector<8x128xf32>
    %54 = vector.broadcast %46 : vector<8x1xf32> to vector<8x128xf32>
    %55 = arith.mulf %54, %3 : vector<8x128xf32>
    %56 = arith.addf %53, %55 : vector<8x128xf32>
    %57 = vector.extract_strided_slice %6 {offsets = [0, 4], sizes = [8, 1], strides = [1, 1]} : vector<8x8xf32> to vector<8x1xf32>
    %58 = vector.extract_strided_slice %8 {offsets = [0, 4], sizes = [8, 1], strides = [1, 1]} : vector<8x8xf32> to vector<8x1xf32>
    %59 = vector.broadcast %57 : vector<8x1xf32> to vector<8x128xf32>
    %60 = arith.mulf %59, %3 : vector<8x128xf32>
    %61 = vector.broadcast %58 : vector<8x1xf32> to vector<8x128xf32>
    %62 = arith.mulf %61, %4 : vector<8x128xf32>
    %63 = arith.subf %60, %62 : vector<8x128xf32>
    %64 = vector.broadcast %57 : vector<8x1xf32> to vector<8x128xf32>
    %65 = arith.mulf %64, %4 : vector<8x128xf32>
    %66 = vector.broadcast %58 : vector<8x1xf32> to vector<8x128xf32>
    %67 = arith.mulf %66, %3 : vector<8x128xf32>
    %68 = arith.addf %65, %67 : vector<8x128xf32>
    %69 = vector.extract_strided_slice %6 {offsets = [0, 5], sizes = [8, 1], strides = [1, 1]} : vector<8x8xf32> to vector<8x1xf32>
    %70 = vector.extract_strided_slice %8 {offsets = [0, 5], sizes = [8, 1], strides = [1, 1]} : vector<8x8xf32> to vector<8x1xf32>
    %71 = vector.broadcast %69 : vector<8x1xf32> to vector<8x128xf32>
    %72 = arith.mulf %71, %3 : vector<8x128xf32>
    %73 = vector.broadcast %70 : vector<8x1xf32> to vector<8x128xf32>
    %74 = arith.mulf %73, %4 : vector<8x128xf32>
    %75 = arith.subf %72, %74 : vector<8x128xf32>
    %76 = vector.broadcast %69 : vector<8x1xf32> to vector<8x128xf32>
    %77 = arith.mulf %76, %4 : vector<8x128xf32>
    %78 = vector.broadcast %70 : vector<8x1xf32> to vector<8x128xf32>
    %79 = arith.mulf %78, %3 : vector<8x128xf32>
    %80 = arith.addf %77, %79 : vector<8x128xf32>
    %81 = vector.extract_strided_slice %6 {offsets = [0, 6], sizes = [8, 1], strides = [1, 1]} : vector<8x8xf32> to vector<8x1xf32>
    %82 = vector.extract_strided_slice %8 {offsets = [0, 6], sizes = [8, 1], strides = [1, 1]} : vector<8x8xf32> to vector<8x1xf32>
    %83 = vector.broadcast %81 : vector<8x1xf32> to vector<8x128xf32>
    %84 = arith.mulf %83, %3 : vector<8x128xf32>
    %85 = vector.broadcast %82 : vector<8x1xf32> to vector<8x128xf32>
    %86 = arith.mulf %85, %4 : vector<8x128xf32>
    %87 = arith.subf %84, %86 : vector<8x128xf32>
    %88 = vector.broadcast %81 : vector<8x1xf32> to vector<8x128xf32>
    %89 = arith.mulf %88, %4 : vector<8x128xf32>
    %90 = vector.broadcast %82 : vector<8x1xf32> to vector<8x128xf32>
    %91 = arith.mulf %90, %3 : vector<8x128xf32>
    %92 = arith.addf %89, %91 : vector<8x128xf32>
    %93 = vector.extract_strided_slice %6 {offsets = [0, 7], sizes = [8, 1], strides = [1, 1]} : vector<8x8xf32> to vector<8x1xf32>
    %94 = vector.extract_strided_slice %8 {offsets = [0, 7], sizes = [8, 1], strides = [1, 1]} : vector<8x8xf32> to vector<8x1xf32>
    %95 = vector.broadcast %93 : vector<8x1xf32> to vector<8x128xf32>
    %96 = arith.mulf %95, %3 : vector<8x128xf32>
    %97 = vector.broadcast %94 : vector<8x1xf32> to vector<8x128xf32>
    %98 = arith.mulf %97, %4 : vector<8x128xf32>
    %99 = arith.subf %96, %98 : vector<8x128xf32>
    %100 = vector.broadcast %93 : vector<8x1xf32> to vector<8x128xf32>
    %101 = arith.mulf %100, %4 : vector<8x128xf32>
    %102 = vector.broadcast %94 : vector<8x1xf32> to vector<8x128xf32>
    %103 = arith.mulf %102, %3 : vector<8x128xf32>
    %104 = arith.addf %101, %103 : vector<8x128xf32>
    %105 = tpu.concatenate %15, %27, %39, %51, %63, %75, %87, %99 in 1 : vector<8x128xf32>, vector<8x128xf32>, vector<8x128xf32>, vector<8x128xf32>, vector<8x128xf32>, vector<8x128xf32>, vector<8x128xf32>, vector<8x128xf32> -> vector<8x1024xf32>
    %106 = tpu.concatenate %20, %32, %44, %56, %68, %80, %92, %104 in 1 : vector<8x128xf32>, vector<8x128xf32>, vector<8x128xf32>, vector<8x128xf32>, vector<8x128xf32>, vector<8x128xf32>, vector<8x128xf32>, vector<8x128xf32> -> vector<8x1024xf32>
    %107 = tpu.concatenate %105, %106 in 0 : vector<8x1024xf32>, vector<8x1024xf32> -> vector<16x1024xf32>
    %108 = arith.truncf %107 : vector<16x1024xf32> to vector<16x1024xbf16>
    %c0_10 = arith.constant 0 : index
    %c0_11 = arith.constant 0 : index
    %109 = vector.load %arg12[%c0_10, %c0_11] : memref<16x256xf32, #tpu.memory_space<vmem>>, vector<16x256xf32>
    %c0_12 = arith.constant 0 : index
    %c0_13 = arith.constant 0 : index
    %110 = vector.load %arg5[%c0_12, %c0_13] : memref<1024x256xbf16, #tpu.memory_space<vmem>>, vector<1024x256xbf16>
    %cst = arith.constant dense<0.000000e+00> : vector<16x256xf32>
    %111 = tpu.matmul %108, %110, %cst {dimension_numbers = #tpu.dot_dimension_numbers<[1], [0], [0], [1], [0, 0, 1, 1], [], []>} : vector<16x1024xbf16>, vector<1024x256xbf16>, vector<16x256xf32> -> vector<16x256xf32>
    %112 = arith.addf %109, %111 : vector<16x256xf32>
    %c0_14 = arith.constant 0 : index
    %c0_15 = arith.constant 0 : index
    %113 = vector.load %arg12[%c0_14, %c0_15] : memref<16x256xf32, #tpu.memory_space<vmem>>, vector<16x256xf32>
    tpu.vector_store %arg12[%c0_14, %c0_15], %112 {strides = array<i32>} : memref<16x256xf32, #tpu.memory_space<vmem>>, vector<16x256xf32>,
    %c1_i32 = arith.constant 1 : i32
    %114 = arith.cmpi eq, %arg0, %c1_i32 : i32
    %115 = arith.extui %114 : i1 to i32
    %c0_i32_16 = arith.constant 0 : i32
    %116 = arith.cmpi ne, %115, %c0_i32_16 : i32
    scf.if %116 {
      %c0_17 = arith.constant 0 : index
      %c0_18 = arith.constant 0 : index
      %117 = vector.load %arg12[%c0_17, %c0_18] : memref<16x256xf32, #tpu.memory_space<vmem>>, vector<16x256xf32>
      %118 = vector.extract_strided_slice %117 {offsets = [0, 0], sizes = [8, 128], strides = [1, 1]} : vector<16x256xf32> to vector<8x128xf32>
      %119 = vector.extract_strided_slice %117 {offsets = [0, 128], sizes = [8, 128], strides = [1, 1]} : vector<16x256xf32> to vector<8x128xf32>
      %120 = vector.extract_strided_slice %117 {offsets = [8, 0], sizes = [8, 128], strides = [1, 1]} : vector<16x256xf32> to vector<8x128xf32>
      %121 = vector.extract_strided_slice %117 {offsets = [8, 128], sizes = [8, 128], strides = [1, 1]} : vector<16x256xf32> to vector<8x128xf32>
      %122 = arith.subf %118, %121 : vector<8x128xf32>
      %123 = arith.addf %120, %119 : vector<8x128xf32>
      %cst_19 = arith.constant 0.000000e+00 : f32
      %124 = vector.broadcast %cst_19 : f32 to vector<8x128xf32>
      %125 = arith.cmpf ogt, %122, %124 : vector<8x128xf32>
      %cst_20 = arith.constant 2.500000e-01 : f32
      %126 = vector.broadcast %cst_20 : f32 to vector<8x128xf32>
      %127 = arith.mulf %126, %122 : vector<8x128xf32>
      %128 = arith.select %125, %122, %127 : vector<8x128xi1>, vector<8x128xf32>
      %cst_21 = arith.constant 0.000000e+00 : f32
      %129 = vector.broadcast %cst_21 : f32 to vector<8x128xf32>
      %130 = arith.cmpf ogt, %123, %129 : vector<8x128xf32>
      %cst_22 = arith.constant 2.500000e-01 : f32
      %131 = vector.broadcast %cst_22 : f32 to vector<8x128xf32>
      %132 = arith.mulf %131, %123 : vector<8x128xf32>
      %133 = arith.select %130, %123, %132 : vector<8x128xi1>, vector<8x128xf32>
      %c0_23 = arith.constant 0 : index
      %c0_24 = arith.constant 0 : index
      %134 = vector.load %arg6[%c0_23, %c0_24] : memref<128x256xf32, #tpu.memory_space<vmem>>, vector<128x256xf32>
      %cst_25 = arith.constant dense<0.000000e+00> : vector<8x256xf32>
      %135 = tpu.matmul %128, %134, %cst_25 {dimension_numbers = #tpu.dot_dimension_numbers<[1], [0], [0], [1], [0, 0, 1, 1], [], []>} : vector<8x128xf32>, vector<128x256xf32>, vector<8x256xf32> -> vector<8x256xf32>
      %c0_26 = arith.constant 0 : index
      %c0_27 = arith.constant 0 : index
      %136 = vector.load %arg8[%c0_26, %c0_27] : memref<1x256xf32, #tpu.memory_space<vmem>>, vector<1x256xf32>
      %137 = vector.broadcast %136 : vector<1x256xf32> to vector<8x256xf32>
      %138 = arith.addf %135, %137 : vector<8x256xf32>
      %c0_28 = arith.constant 0 : index
      %c0_29 = arith.constant 0 : index
      %139 = vector.load %arg7[%c0_28, %c0_29] : memref<128x256xf32, #tpu.memory_space<vmem>>, vector<128x256xf32>
      %cst_30 = arith.constant dense<0.000000e+00> : vector<8x256xf32>
      %140 = tpu.matmul %133, %139, %cst_30 {dimension_numbers = #tpu.dot_dimension_numbers<[1], [0], [0], [1], [0, 0, 1, 1], [], []>} : vector<8x128xf32>, vector<128x256xf32>, vector<8x256xf32> -> vector<8x256xf32>
      %c0_31 = arith.constant 0 : index
      %c0_32 = arith.constant 0 : index
      %141 = vector.load %arg9[%c0_31, %c0_32] : memref<1x256xf32, #tpu.memory_space<vmem>>, vector<1x256xf32>
      %142 = vector.broadcast %141 : vector<1x256xf32> to vector<8x256xf32>
      %143 = arith.addf %140, %142 : vector<8x256xf32>
      %144 = arith.negf %138 : vector<8x256xf32>
      %145 = math.exp %144 : vector<8x256xf32>
      %cst_33 = arith.constant 1.000000e+00 : f32
      %146 = vector.broadcast %cst_33 : f32 to vector<8x256xf32>
      %147 = arith.addf %146, %145 : vector<8x256xf32>
      %148 = arith.divf %146, %147 : vector<8x256xf32>
      %c0_34 = arith.constant 0 : index
      %c0_35 = arith.constant 0 : index
      %149 = vector.load %arg10[%c0_34, %c0_35] : memref<8x256xf32, #tpu.memory_space<vmem>>, vector<8x256xf32>
      tpu.vector_store %arg10[%c0_34, %c0_35], %148 {strides = array<i32>} : memref<8x256xf32, #tpu.memory_space<vmem>>, vector<8x256xf32>,
      %150 = arith.negf %143 : vector<8x256xf32>
      %151 = math.exp %150 : vector<8x256xf32>
      %cst_36 = arith.constant 1.000000e+00 : f32
      %152 = vector.broadcast %cst_36 : f32 to vector<8x256xf32>
      %153 = arith.addf %152, %151 : vector<8x256xf32>
      %154 = arith.divf %152, %153 : vector<8x256xf32>
      %c0_37 = arith.constant 0 : index
      %c0_38 = arith.constant 0 : index
      %155 = vector.load %arg11[%c0_37, %c0_38] : memref<8x256xf32, #tpu.memory_space<vmem>>, vector<8x256xf32>
      tpu.vector_store %arg11[%c0_37, %c0_38], %154 {strides = array<i32>} : memref<8x256xf32, #tpu.memory_space<vmem>>, vector<8x256xf32>,
    } else {
    }
    return
  }
  func.func @transform_0(%arg0: i32) -> (i32, i32) {
    %c0_i32 = arith.constant 0 : i32
    %c0_i32_0 = arith.constant 0 : i32
    %c0_i32_1 = arith.constant 0 : i32
    return %c0_i32, %c0_i32_0 : i32, i32
  }
  func.func @transform_1(%arg0: i32) -> (i32, i32) {
    %c0_i32 = arith.constant 0 : i32
    %c0_i32_0 = arith.constant 0 : i32
    %c0_i32_1 = arith.constant 0 : i32
    return %c0_i32, %c0_i32_0 : i32, i32
  }
  func.func @transform_2(%arg0: i32) -> (i32, i32, i32) {
    %c0_i32 = arith.constant 0 : i32
    %c0_i32_0 = arith.constant 0 : i32
    %c0_i32_1 = arith.constant 0 : i32
    return %arg0, %c0_i32, %c0_i32_0 : i32, i32, i32
  }
  func.func @transform_3(%arg0: i32) -> (i32, i32, i32) {
    %c0_i32 = arith.constant 0 : i32
    %c0_i32_0 = arith.constant 0 : i32
    %c0_i32_1 = arith.constant 0 : i32
    return %arg0, %c0_i32, %c0_i32_0 : i32, i32, i32
  }
  func.func @transform_4(%arg0: i32) -> (i32, i32) {
    %c0_i32 = arith.constant 0 : i32
    %c0_i32_0 = arith.constant 0 : i32
    return %arg0, %c0_i32 : i32, i32
  }
  func.func @transform_5(%arg0: i32) -> (i32, i32) {
    %c0_i32 = arith.constant 0 : i32
    %c0_i32_0 = arith.constant 0 : i32
    %c0_i32_1 = arith.constant 0 : i32
    return %c0_i32, %c0_i32_0 : i32, i32
  }
  func.func @transform_6(%arg0: i32) -> (i32, i32) {
    %c0_i32 = arith.constant 0 : i32
    %c0_i32_0 = arith.constant 0 : i32
    %c0_i32_1 = arith.constant 0 : i32
    return %c0_i32, %c0_i32_0 : i32, i32
  }
  func.func @transform_7(%arg0: i32) -> (i32, i32) {
    %c0_i32 = arith.constant 0 : i32
    %c0_i32_0 = arith.constant 0 : i32
    %c0_i32_1 = arith.constant 0 : i32
    return %c0_i32, %c0_i32_0 : i32, i32
  }
  func.func @transform_8(%arg0: i32) -> (i32, i32) {
    %c0_i32 = arith.constant 0 : i32
    %c0_i32_0 = arith.constant 0 : i32
    %c0_i32_1 = arith.constant 0 : i32
    return %c0_i32, %c0_i32_0 : i32, i32
  }
  func.func @transform_9(%arg0: i32) -> (i32, i32) {
    %c0_i32 = arith.constant 0 : i32
    %c0_i32_0 = arith.constant 0 : i32
    %c0_i32_1 = arith.constant 0 : i32
    return %c0_i32, %c0_i32_0 : i32, i32
  }
  func.func @transform_10(%arg0: i32) -> (i32, i32) {
    %c0_i32 = arith.constant 0 : i32
    %c0_i32_0 = arith.constant 0 : i32
    %c0_i32_1 = arith.constant 0 : i32
    return %c0_i32, %c0_i32_0 : i32, i32
  }
}

</mosaic_0001>

<llo_original>
// kernel: tpu_custom_call.1
$region0: #{tpu_custom_call.1}
  #allocation0 [shape = 'u32[]', space=smem, size = 0x4, offset = 0x4, fixed_abs, tag = 'smem constant byte address 0x4 - core index']
  #allocation1 [shape = 'u32[144,128]{1,0:T(1,128)}', space=vmem, size = 0x12000, scoped, tag = 'internal scratch']
  #allocation2 [shape = 'f32[16,256]{1,0:T(8,128)}', space=vmem, size = 0x4000, scoped, tag = 'scratch operand']
  %s0 = inlined_call_operand.hbm [shape: f32[8,128], index: 0, kind: input, shape index: {}]
  %s1 = inlined_call_operand.hbm [shape: f32[8,128], index: 1, kind: input, shape index: {}]
  %s2 = inlined_call_operand.hbm [shape: f32[2,8,8], index: 2, kind: input, shape index: {}]
  %s3 = inlined_call_operand.hbm [shape: f32[2,8,8], index: 3, kind: input, shape index: {}]
  %s4 = inlined_call_operand.hbm [shape: bf16[2048,256], index: 4, kind: input, shape index: {}]
  %s5 = inlined_call_operand.hbm [shape: f32[128,256], index: 5, kind: input, shape index: {}]
  %s6 = inlined_call_operand.hbm [shape: f32[128,256], index: 6, kind: input, shape index: {}]
  %s7 = inlined_call_operand.vmem [shape: f32[1,256], index: 7, kind: input, shape index: {}]
  %s8 = inlined_call_operand.vmem [shape: f32[1,256], index: 8, kind: input, shape index: {}]
  %s9 = inlined_call_operand.hbm [shape: f32[8,256], index: 9, kind: output, shape index: {0}]
  %s10 = inlined_call_operand.hbm [shape: f32[8,256], index: 10, kind: output, shape index: {1}]
  %11 = xla_tuple %s9, %s10
  %s12 = sld [smem:[#allocation0]]
  $region113: #{tpu_custom_call.1} parent=0
    _
  %s14 = ssub.s32 1, %s12
  %s15 = scalar_select 0, %s14, %s12
  $region1: #{tpu_custom_call.1} parent=0
    #allocation3 [shape = 'u8[4096]{0}', space=vmem, size = 0x1000, scoped, tag = 'input window, operand 0, single buffered']
    #allocation4 [shape = 's32[2]{0}', space=sflag, size = 0x8, scoped, tag = 'scoped memory for tpu_custom_call.1']
    #allocation5 [shape = 's32[2]{0}', space=sflag, size = 0x8, scoped, tag = 'scoped memory for tpu_custom_call.1']
    #allocation6 [shape = 'u8[4096]{0}', space=vmem, size = 0x1000, scoped, tag = 'input window, operand 1, single buffered']
    #allocation7 [shape = 's32[1]{0}', space=sflag, size = 0x4, scoped, tag = 'scoped memory for tpu_custom_call.1']
    #allocation8 [shape = 'u8[8192]{0}', space=vmem, size = 0x2000, scoped, tag = 'input window, operand 2']
    #allocation9 [shape = 'u8[8192]{0}', space=vmem, size = 0x2000, scoped, tag = 'input window, operand 3']
    #allocation10 [shape = 'u8[1048576]{0}', space=vmem, size = 0x100000, scoped, tag = 'input window, operand 4']
    #allocation11 [shape = 'u8[131072]{0}', space=vmem, size = 0x20000, scoped, tag = 'input window, operand 5, single buffered']
    #allocation12 [shape = 'u8[131072]{0}', space=vmem, size = 0x20000, scoped, tag = 'input window, operand 6, single buffered']
    #allocation13 [shape = 's32[1]{0}', space=sflag, size = 0x4, scoped, tag = 'scoped memory for tpu_custom_call.1']
    #allocation14 [shape = 'u8[8192]{0}', space=vmem, size = 0x2000, scoped, tag = 'output window, operand 0, single buffered']
    #allocation15 [shape = 'u8[8192]{0}', space=vmem, size = 0x2000, scoped, tag = 'output window, operand 1, single buffered']
    #allocation16 [shape = 's32[1]{0}', space=sflag, size = 0x4, scoped, tag = 'scoped memory for tpu_custom_call.1']
    %16 = vsyncpa [#allocation4], 0
    %17 = vsyncpa [#allocation7], 0
    %18 = vsyncpa [#allocation13], 0
    %19 = vsyncpa [#allocation5], 0
    %20 = vsyncpa [#allocation16], 0
    loop: start=0, step=1, limit=4
    $region2: #{tpu_custom_call.1} parent=1 // loop_pre_header
      _
    $region3: #{tpu_custom_call.1} parent=1 // loop_header
      %s22 = sphi 0, %s26
      %p23 = scmp.ge.s32.totalorder %s22, 4
      %s30 = sphi 0, %s30
      %s32 = sphi 0, %s30
      %s33 = sphi 0, %s32
      %s47 = sphi 0, %s33
      %s51 = sphi 0, %s51
      %s53 = sphi 0, %s51
      %s54 = sphi 0, %s53
      %s68 = sphi 0, %s54
      %s74 = sphi 0, %s76
      %s77 = sphi 0, %s74
      %s78 = sphi 0, %s77
      %s94 = sphi 0, %s78
      %s100 = sphi 0, %s102
      %s103 = sphi 0, %s100
      %s104 = sphi 0, %s103
      %s120 = sphi 0, %s104
      %s126 = sphi 0, %s128
      %s129 = sphi 0, %s126
      %s130 = sphi 0, %s129
      %s146 = sphi 0, %s130
      %s150 = sphi 0, %s150
      %s152 = sphi 0, %s150
      %s153 = sphi 0, %s152
      %s167 = sphi 0, %s153
      %s171 = sphi 0, %s171
      %s173 = sphi 0, %s171
      %s174 = sphi 0, %s173
      %s188 = sphi 0, %s174
      %s192 = sphi 0, %s192
      %s194 = sphi 0, %s192
      %s195 = sphi 0, %s194
      %s209 = sphi 0, %s195
      %s213 = sphi 0, %s213
      %s215 = sphi 0, %s213
      %s216 = sphi 0, %s215
      %s230 = sphi 0, %s216
      %s234 = sphi 0, %s234
      %s236 = sphi 0, %s234
      %s237 = sphi 0, %s236
      %s251 = sphi 0, %s237
      %s255 = sphi 0, %s255
      %s257 = sphi 0, %s255
      %s258 = sphi 0, %s257
      %s272 = sphi 0, %s258
    $region4: #{tpu_custom_call.1} parent=1 // loop_header_branch
      %25 = sbr.rel (%p23) target = $region8
    $region5: #{tpu_custom_call.1} parent=1 // loop_body
      %s27 = ssub.s32 %s22, 1
      %s28 = ssub.s32 %s22, 2
      %s29 = sadd.s32 %s22, 1
      %s31 = sadd.s32 %s30, 1
      %p34 = scmp.eq.s32.totalorder %s22, 1
      %p35 = scmp.ne.s32.totalorder %s30, %s32
      %p36 = scmp.eq.s32.totalorder %s22, 0
      %p37 = por %p35, %p36
      %p38 = scmp.ne.s32.totalorder %s30, %s32
      %p39 = scmp.eq.s32.totalorder %s27, 1
      %p40 = por %p38, %p39
      %p41 = scmp.ne.s32.totalorder %s32, %s33
      %p42 = scmp.eq.s32.totalorder %s27, 0
      %p43 = por %p41, %p42
      %p44 = scmp.ne.s32.totalorder %s32, %s33
      %p45 = scmp.eq.s32.totalorder %s28, 1
      %p46 = por %p44, %p45
      %p48 = scmp.ne.s32.totalorder %s33, %s47
      %p49 = scmp.eq.s32.totalorder %s28, 0
      %p50 = por %p48, %p49
      %s52 = sadd.s32 %s51, 1
      %p55 = scmp.eq.s32.totalorder %s22, 1
      %p56 = scmp.ne.s32.totalorder %s51, %s53
      %p57 = scmp.eq.s32.totalorder %s22, 0
      %p58 = por %p56, %p57
      %p59 = scmp.ne.s32.totalorder %s51, %s53
      %p60 = scmp.eq.s32.totalorder %s27, 1
      %p61 = por %p59, %p60
      %p62 = scmp.ne.s32.totalorder %s53, %s54
      %p63 = scmp.eq.s32.totalorder %s27, 0
      %p64 = por %p62, %p63
      %p65 = scmp.ne.s32.totalorder %s53, %s54
      %p66 = scmp.eq.s32.totalorder %s28, 1
      %p67 = por %p65, %p66
      %p69 = scmp.ne.s32.totalorder %s54, %s68
      %p70 = scmp.eq.s32.totalorder %s28, 0
      %p71 = por %p69, %p70
      %s72 = ssub.s32 %s22, %s29
      %p73 = scmp.eq.s32.totalorder %s72, 0
      %s75 = sadd.s32 %s74, 1
      %s76 = scalar_select %p73, %s74, %s75
      %p79 = pneg %p73
      %p80 = scmp.eq.s32.totalorder %s22, 1
      %p81 = por %p79, %p80
      %p82 = scmp.ne.s32.totalorder %s74, %s77
      %p83 = scmp.eq.s32.totalorder %s22, 0
      %p84 = por %p82, %p83
      %p85 = scmp.ne.s32.totalorder %s74, %s77
      %p86 = scmp.eq.s32.totalorder %s27, 1
      %p87 = por %p85, %p86
      %p88 = scmp.ne.s32.totalorder %s77, %s78
      %p89 = scmp.eq.s32.totalorder %s27, 0
      %p90 = por %p88, %p89
      %p91 = scmp.ne.s32.totalorder %s77, %s78
      %p92 = scmp.eq.s32.totalorder %s28, 1
      %p93 = por %p91, %p92
      %p95 = scmp.ne.s32.totalorder %s78, %s94
      %p96 = scmp.eq.s32.totalorder %s28, 0
      %p97 = por %p95, %p96
      %s98 = ssub.s32 %s22, %s29
      %p99 = scmp.eq.s32.totalorder %s98, 0
      %s101 = sadd.s32 %s100, 1
      %s102 = scalar_select %p99, %s100, %s101
      %p105 = pneg %p99
      %p106 = scmp.eq.s32.totalorder %s22, 1
      %p107 = por %p105, %p106
      %p108 = scmp.ne.s32.totalorder %s100, %s103
      %p109 = scmp.eq.s32.totalorder %s22, 0
      %p110 = por %p108, %p109
      %p111 = scmp.ne.s32.totalorder %s100, %s103
      %p112 = scmp.eq.s32.totalorder %s27, 1
      %p113 = por %p111, %p112
      %p114 = scmp.ne.s32.totalorder %s103, %s104
      %p115 = scmp.eq.s32.totalorder %s27, 0
      %p116 = por %p114, %p115
      %p117 = scmp.ne.s32.totalorder %s103, %s104
      %p118 = scmp.eq.s32.totalorder %s28, 1
      %p119 = por %p117, %p118
      %p121 = scmp.ne.s32.totalorder %s104, %s120
      %p122 = scmp.eq.s32.totalorder %s28, 0
      %p123 = por %p121, %p122
      %s124 = ssub.s32 %s22, %s29
      %p125 = scmp.eq.s32.totalorder %s124, 0
      %s127 = sadd.s32 %s126, 1
      %s128 = scalar_select %p125, %s126, %s127
      %p131 = pneg %p125
      %p132 = scmp.eq.s32.totalorder %s22, 1
      %p133 = por %p131, %p132
      %p134 = scmp.ne.s32.totalorder %s126, %s129
      %p135 = scmp.eq.s32.totalorder %s22, 0
      %p136 = por %p134, %p135
      %p137 = scmp.ne.s32.totalorder %s126, %s129
      %p138 = scmp.eq.s32.totalorder %s27, 1
      %p139 = por %p137, %p138
      %p140 = scmp.ne.s32.totalorder %s129, %s130
      %p141 = scmp.eq.s32.totalorder %s27, 0
      %p142 = por %p140, %p141
      %p143 = scmp.ne.s32.totalorder %s129, %s130
      %p144 = scmp.eq.s32.totalorder %s28, 1
      %p145 = por %p143, %p144
      %p147 = scmp.ne.s32.totalorder %s130, %s146
      %p148 = scmp.eq.s32.totalorder %s28, 0
      %p149 = por %p147, %p148
      %s151 = sadd.s32 %s150, 1
      %p154 = scmp.eq.s32.totalorder %s22, 1
      %p155 = scmp.ne.s32.totalorder %s150, %s152
      %p156 = scmp.eq.s32.totalorder %s22, 0
      %p157 = por %p155, %p156
      %p158 = scmp.ne.s32.totalorder %s150, %s152
      %p159 = scmp.eq.s32.totalorder %s27, 1
      %p160 = por %p158, %p159
      %p161 = scmp.ne.s32.totalorder %s152, %s153
      %p162 = scmp.eq.s32.totalorder %s27, 0
      %p163 = por %p161, %p162
      %p164 = scmp.ne.s32.totalorder %s152, %s153
      %p165 = scmp.eq.s32.totalorder %s28, 1
      %p166 = por %p164, %p165
      %p168 = scmp.ne.s32.totalorder %s153, %s167
      %p169 = scmp.eq.s32.totalorder %s28, 0
      %p170 = por %p168, %p169
      %s172 = sadd.s32 %s171, 1
      %p175 = scmp.eq.s32.totalorder %s22, 1
      %p176 = scmp.ne.s32.totalorder %s171, %s173
      %p177 = scmp.eq.s32.totalorder %s22, 0
      %p178 = por %p176, %p177
      %p179 = scmp.ne.s32.totalorder %s171, %s173
      %p180 = scmp.eq.s32.totalorder %s27, 1
      %p181 = por %p179, %p180
      %p182 = scmp.ne.s32.totalorder %s173, %s174
      %p183 = scmp.eq.s32.totalorder %s27, 0
      %p184 = por %p182, %p183
      %p185 = scmp.ne.s32.totalorder %s173, %s174
      %p186 = scmp.eq.s32.totalorder %s28, 1
      %p187 = por %p185, %p186
      %p189 = scmp.ne.s32.totalorder %s174, %s188
      %p190 = scmp.eq.s32.totalorder %s28, 0
      %p191 = por %p189, %p190
      %s193 = sadd.s32 %s192, 1
      %p196 = scmp.eq.s32.totalorder %s22, 1
      %p197 = scmp.ne.s32.totalorder %s192, %s194
      %p198 = scmp.eq.s32.totalorder %s22, 0
      %p199 = por %p197, %p198
      %p200 = scmp.ne.s32.totalorder %s192, %s194
      %p201 = scmp.eq.s32.totalorder %s27, 1
      %p202 = por %p200, %p201
      %p203 = scmp.ne.s32.totalorder %s194, %s195
      %p204 = scmp.eq.s32.totalorder %s27, 0
      %p205 = por %p203, %p204
      %p206 = scmp.ne.s32.totalorder %s194, %s195
      %p207 = scmp.eq.s32.totalorder %s28, 1
      %p208 = por %p206, %p207
      %p210 = scmp.ne.s32.totalorder %s195, %s209
      %p211 = scmp.eq.s32.totalorder %s28, 0
      %p212 = por %p210, %p211
      %s214 = sadd.s32 %s213, 1
      %p217 = scmp.eq.s32.totalorder %s22, 1
      %p218 = scmp.ne.s32.totalorder %s213, %s215
      %p219 = scmp.eq.s32.totalorder %s22, 0
      %p220 = por %p218, %p219
      %p221 = scmp.ne.s32.totalorder %s213, %s215
      %p222 = scmp.eq.s32.totalorder %s27, 1
      %p223 = por %p221, %p222
      %p224 = scmp.ne.s32.totalorder %s215, %s216
      %p225 = scmp.eq.s32.totalorder %s27, 0
      %p226 = por %p224, %p225
      %p227 = scmp.ne.s32.totalorder %s215, %s216
      %p228 = scmp.eq.s32.totalorder %s28, 1
      %p229 = por %p227, %p228
      %p231 = scmp.ne.s32.totalorder %s216, %s230
      %p232 = scmp.eq.s32.totalorder %s28, 0
      %p233 = por %p231, %p232
      %s235 = sadd.s32 %s234, 1
      %p238 = scmp.eq.s32.totalorder %s22, 1
      %p239 = scmp.ne.s32.totalorder %s234, %s236
      %p240 = scmp.eq.s32.totalorder %s22, 0
      %p241 = por %p239, %p240
      %p242 = scmp.ne.s32.totalorder %s234, %s236
      %p243 = scmp.eq.s32.totalorder %s27, 1
      %p244 = por %p242, %p243
      %p245 = scmp.ne.s32.totalorder %s236, %s237
      %p246 = scmp.eq.s32.totalorder %s27, 0
      %p247 = por %p245, %p246
      %p248 = scmp.ne.s32.totalorder %s236, %s237
      %p249 = scmp.eq.s32.totalorder %s28, 1
      %p250 = por %p248, %p249
      %p252 = scmp.ne.s32.totalorder %s237, %s251
      %p253 = scmp.eq.s32.totalorder %s28, 0
      %p254 = por %p252, %p253
      %s256 = sadd.s32 %s255, 1
      %p259 = scmp.eq.s32.totalorder %s22, 1
      %p260 = scmp.ne.s32.totalorder %s255, %s257
      %p261 = scmp.eq.s32.totalorder %s22, 0
      %p262 = por %p260, %p261
      %p263 = scmp.ne.s32.totalorder %s255, %s257
      %p264 = scmp.eq.s32.totalorder %s27, 1
      %p265 = por %p263, %p264
      %p266 = scmp.ne.s32.totalorder %s257, %s258
      %p267 = scmp.eq.s32.totalorder %s27, 0
      %p268 = por %p266, %p267
      %p269 = scmp.ne.s32.totalorder %s257, %s258
      %p270 = scmp.eq.s32.totalorder %s28, 1
      %p271 = por %p269, %p270
      %p273 = scmp.ne.s32.totalorder %s258, %s272
      %p274 = scmp.eq.s32.totalorder %s28, 0
      %p275 = por %p273, %p274
      %p276 = scmp.le.s32.totalorder 1, %s22
      %p277 = scmp.lt.s32.totalorder %s22, 3
      %p278 = pnand %p276, %p277
      %p279 = pneg %p278
      // Predicated region
      $region9: #{tpu_custom_call.1} parent=5 // pred_check
        _
      $region10: #{tpu_custom_call.1} parent=5 // pred_check_branch
        %281 = sbr.rel (%p278) target = $region12
      $region11: #{tpu_custom_call.1} parent=5 // pred_region
        %s282 = ssub.s32 %s22, 1
        // Predicated region
        $region13: #{tpu_custom_call.1} parent=11 // pred_check
          %p283 = pneg %p43
        $region14: #{tpu_custom_call.1} parent=11 // pred_check_branch
          %285 = sbr.rel (%p283) target = $region16
        $region15: #{tpu_custom_call.1} parent=11 // pred_region
          %s287 = ssub.s32 128, 128
          %288 = vsyncadd [#allocation4], %s287
          %s290 = sshll.u32 [#allocation3], 4
          %s291 = int_to_ptr.vmem [resolvable:$true] %s290
          %293 = dma.hbm_to_vmem [thread:$0]  %s0, 128, %s291, [#allocation4]
        $region16: #{tpu_custom_call.1} parent=11 // pred_fallthru
          _
        // Predicated region
        $region17: #{tpu_custom_call.1} parent=11 // pred_check
          %p294 = pneg %p64
        $region18: #{tpu_custom_call.1} parent=11 // pred_check_branch
          %296 = sbr.rel (%p294) target = $region20
        $region19: #{tpu_custom_call.1} parent=11 // pred_region
          %s298 = ssub.s32 128, 128
          %299 = vsyncadd [#allocation7], %s298
          %s301 = sshll.u32 [#allocation6], 4
          %s302 = int_to_ptr.vmem [resolvable:$true] %s301
          %304 = dma.hbm_to_vmem [thread:$0]  %s1, 128, %s302, [#allocation7]
        $region20: #{tpu_custom_call.1} parent=11 // pred_fallthru
          _
        // Predicated region
        $region21: #{tpu_custom_call.1} parent=11 // pred_check
          %p305 = pneg %p163
        $region22: #{tpu_custom_call.1} parent=11 // pred_check_branch
          %307 = sbr.rel (%p305) target = $region24
        $region23: #{tpu_custom_call.1} parent=11 // pred_region
          %s309 = ssub.s32 4096, 4096
          %310 = vsyncadd [#allocation7], %s309
          %s311 = sshll.u32 [#allocation11], 4
          %s312 = int_to_ptr.vmem [resolvable:$true] %s311
          %317 = dma.hbm_to_vmem [thread:$0]  %s5, 4096, %s312, [#allocation7], 256, 256, 16
        $region24: #{tpu_custom_call.1} parent=11 // pred_fallthru
          _
        // Predicated region
        $region25: #{tpu_custom_call.1} parent=11 // pred_check
          %p318 = pneg %p184
        $region26: #{tpu_custom_call.1} parent=11 // pred_check_branch
          %320 = sbr.rel (%p318) target = $region28
        $region27: #{tpu_custom_call.1} parent=11 // pred_region
          %s322 = ssub.s32 4096, 4096
          %323 = vsyncadd [#allocation13], %s322
          %s324 = sshll.u32 [#allocation12], 4
          %s325 = int_to_ptr.vmem [resolvable:$true] %s324
          %330 = dma.hbm_to_vmem [thread:$0]  %s6, 4096, %s325, [#allocation13], 256, 256, 16
        $region28: #{tpu_custom_call.1} parent=11 // pred_fallthru
          _
        // Predicated region
        $region29: #{tpu_custom_call.1} parent=11 // pred_check
          %p331 = pneg %p205
        $region30: #{tpu_custom_call.1} parent=11 // pred_check_branch
          %333 = sbr.rel (%p331) target = $region32
        $region31: #{tpu_custom_call.1} parent=11 // pred_region
          _
        $region32: #{tpu_custom_call.1} parent=11 // pred_fallthru
          _
        // Predicated region
        $region33: #{tpu_custom_call.1} parent=11 // pred_check
          %p334 = pneg %p226
        $region34: #{tpu_custom_call.1} parent=11 // pred_check_branch
          %336 = sbr.rel (%p334) target = $region36
        $region35: #{tpu_custom_call.1} parent=11 // pred_region
          _
        $region36: #{tpu_custom_call.1} parent=11 // pred_fallthru
          _
      $region12: #{tpu_custom_call.1} parent=5 // pred_fallthru
        _
      %p337 = scmp.lt.s32.totalorder %s22, 2
      // Predicated region
      $region37: #{tpu_custom_call.1} parent=5 // pred_check
        %p338 = pneg %p337
      $region38: #{tpu_custom_call.1} parent=5 // pred_check_branch
        %340 = sbr.rel (%p338) target = $region40
      $region39: #{tpu_custom_call.1} parent=5 // pred_region
        // Predicated region
        $region41: #{tpu_custom_call.1} parent=39 // pred_check
          %p341 = pneg %p84
        $region42: #{tpu_custom_call.1} parent=39 // pred_check_branch
          %343 = sbr.rel (%p341) target = $region44
        $region43: #{tpu_custom_call.1} parent=39 // pred_region
          %s344 = sand.u32 %s22, 1
          %s345 = scalar_lea.sflag [#allocation4], %s344
          %s346 = sand.u32 %s74, 1
          %s347 = smul.addr %s346, 8
          %s348 = scalar_lea.vmem [#allocation8], %s347
          %s350 = ssub.s32 128, 128
          %351 = vsyncadd %s345, %s350
          %s352 = smul.addr %s22, 128
          %s353 = scalar_lea.hbm %s2, %s352
          %s355 = sshll.u32 %s348, 4
          %s356 = int_to_ptr.vmem [resolvable:$true] %s355
          %358 = dma.hbm_to_vmem [thread:$0]  %s353, 128, %s356, %s345
        $region44: #{tpu_custom_call.1} parent=39 // pred_fallthru
          _
        // Predicated region
        $region45: #{tpu_custom_call.1} parent=39 // pred_check
          %p359 = pneg %p110
        $region46: #{tpu_custom_call.1} parent=39 // pred_check_branch
          %361 = sbr.rel (%p359) target = $region48
        $region47: #{tpu_custom_call.1} parent=39 // pred_region
          %s362 = sand.u32 %s22, 1
          %s363 = scalar_lea.sflag [#allocation4], %s362
          %s364 = sand.u32 %s100, 1
          %s365 = smul.addr %s364, 8
          %s366 = scalar_lea.vmem [#allocation9], %s365
          %s368 = ssub.s32 128, 128
          %369 = vsyncadd %s363, %s368
          %s370 = smul.addr %s22, 128
          %s371 = scalar_lea.hbm %s3, %s370
          %s373 = sshll.u32 %s366, 4
          %s374 = int_to_ptr.vmem [resolvable:$true] %s373
          %376 = dma.hbm_to_vmem [thread:$0]  %s371, 128, %s374, %s363
        $region48: #{tpu_custom_call.1} parent=39 // pred_fallthru
          _
        // Predicated region
        $region49: #{tpu_custom_call.1} parent=39 // pred_check
          %p377 = pneg %p136
        $region50: #{tpu_custom_call.1} parent=39 // pred_check_branch
          %379 = sbr.rel (%p377) target = $region52
        $region51: #{tpu_custom_call.1} parent=39 // pred_region
          %s380 = sand.u32 %s22, 1
          %s381 = scalar_lea.sflag [#allocation4], %s380
          %s382 = sand.u32 %s126, 1
          %s383 = smul.addr %s382, 1024
          %s384 = scalar_lea.vmem [#allocation10], %s383
          %s385 = smul.u32 128, %s22
          %s387 = ssub.s32 16384, 16384
          %388 = vsyncadd %s381, %s387
          %s389 = smul.addr %s385, 2
          %s390 = smul.addr %s389, 64
          %s391 = scalar_lea.hbm %s4, %s390
          %s392 = sshll.u32 %s384, 4
          %s393 = int_to_ptr.vmem [resolvable:$true] %s392
          %398 = dma.hbm_to_vmem [thread:$0]  %s391, 16384, %s393, %s381, 128, 128, 8
        $region52: #{tpu_custom_call.1} parent=39 // pred_fallthru
          _
      $region40: #{tpu_custom_call.1} parent=5 // pred_fallthru
        _
      %p399 = scmp.le.s32.totalorder 1, %s22
      %p400 = scmp.lt.s32.totalorder %s22, 3
      %p401 = pnand %p399, %p400
      %p402 = pneg %p401
      // Predicated region
      $region53: #{tpu_custom_call.1} parent=5 // pred_check
        _
      $region54: #{tpu_custom_call.1} parent=5 // pred_check_branch
        %404 = sbr.rel (%p401) target = $region56
      $region55: #{tpu_custom_call.1} parent=5 // pred_region
        %s405 = ssub.s32 %s22, 1
        // Predicated region
        $region57: #{tpu_custom_call.1} parent=55 // pred_check
          %p406 = pneg %p43
        $region58: #{tpu_custom_call.1} parent=55 // pred_check_branch
          %408 = sbr.rel (%p406) target = $region60
        $region59: #{tpu_custom_call.1} parent=55 // pred_region
          %409 = dma.done [#allocation4], 128
        $region60: #{tpu_custom_call.1} parent=55 // pred_fallthru
          _
        // Predicated region
        $region61: #{tpu_custom_call.1} parent=55 // pred_check
          %p410 = pneg %p64
        $region62: #{tpu_custom_call.1} parent=55 // pred_check_branch
          %412 = sbr.rel (%p410) target = $region64
        $region63: #{tpu_custom_call.1} parent=55 // pred_region
          %413 = dma.done [#allocation7], 128
        $region64: #{tpu_custom_call.1} parent=55 // pred_fallthru
          _
        %s414 = sand.u32 %s27, 1
        %s415 = scalar_lea.sflag [#allocation4], %s414
        %s416 = sand.u32 %s77, 1
        %s417 = smul.addr %s416, 8
        %s418 = scalar_lea.vmem [#allocation8], %s417
        // Predicated region
        $region65: #{tpu_custom_call.1} parent=55 // pred_check
          %p419 = pneg %p90
        $region66: #{tpu_custom_call.1} parent=55 // pred_check_branch
          %421 = sbr.rel (%p419) target = $region68
        $region67: #{tpu_custom_call.1} parent=55 // pred_region
          %422 = dma.done %s415, 128
        $region68: #{tpu_custom_call.1} parent=55 // pred_fallthru
          _
        %s423 = sand.u32 %s27, 1
        %s424 = scalar_lea.sflag [#allocation4], %s423
        %s425 = sand.u32 %s103, 1
        %s426 = smul.addr %s425, 8
        %s427 = scalar_lea.vmem [#allocation9], %s426
        // Predicated region
        $region69: #{tpu_custom_call.1} parent=55 // pred_check
          %p428 = pneg %p116
        $region70: #{tpu_custom_call.1} parent=55 // pred_check_branch
          %430 = sbr.rel (%p428) target = $region72
        $region71: #{tpu_custom_call.1} parent=55 // pred_region
          %431 = dma.done %s424, 128
        $region72: #{tpu_custom_call.1} parent=55 // pred_fallthru
          _
        %s432 = sand.u32 %s27, 1
        %s433 = scalar_lea.sflag [#allocation4], %s432
        %s434 = sand.u32 %s129, 1
        %s435 = smul.addr %s434, 1024
        %s436 = scalar_lea.vmem [#allocation10], %s435
        // Predicated region
        $region73: #{tpu_custom_call.1} parent=55 // pred_check
          %p437 = pneg %p142
        $region74: #{tpu_custom_call.1} parent=55 // pred_check_branch
          %439 = sbr.rel (%p437) target = $region76
        $region75: #{tpu_custom_call.1} parent=55 // pred_region
          %440 = dma.done %s433, 16384
        $region76: #{tpu_custom_call.1} parent=55 // pred_fallthru
          _
        // Predicated region
        $region77: #{tpu_custom_call.1} parent=55 // pred_check
          %p441 = pneg %p163
        $region78: #{tpu_custom_call.1} parent=55 // pred_check_branch
          %443 = sbr.rel (%p441) target = $region80
        $region79: #{tpu_custom_call.1} parent=55 // pred_region
          %444 = dma.done [#allocation7], 4096
        $region80: #{tpu_custom_call.1} parent=55 // pred_fallthru
          _
        // Predicated region
        $region81: #{tpu_custom_call.1} parent=55 // pred_check
          %p445 = pneg %p184
        $region82: #{tpu_custom_call.1} parent=55 // pred_check_branch
          %447 = sbr.rel (%p445) target = $region84
        $region83: #{tpu_custom_call.1} parent=55 // pred_region
          %448 = dma.done [#allocation13], 4096
        $region84: #{tpu_custom_call.1} parent=55 // pred_fallthru
          _
        %p449 = pneg %p43
        %p450 = pneg %p40
        %p451 = pneg %p64
        %p452 = pneg %p61
        %s453 = sand.u32 %s27, 1
        %s454 = scalar_lea.sflag [#allocation4], %s453
        %s455 = sand.u32 %s77, 1
        %s456 = smul.addr %s455, 8
        %s457 = scalar_lea.vmem [#allocation8], %s456
        %p458 = pneg %p90
        %p459 = pneg %p87
        %s460 = sand.u32 %s27, 1
        %s461 = scalar_lea.sflag [#allocation4], %s460
        %s462 = sand.u32 %s103, 1
        %s463 = smul.addr %s462, 8
        %s464 = scalar_lea.vmem [#allocation9], %s463
        %p465 = pneg %p116
        %p466 = pneg %p113
        %s467 = sand.u32 %s27, 1
        %s468 = scalar_lea.sflag [#allocation4], %s467
        %s469 = sand.u32 %s129, 1
        %s470 = smul.addr %s469, 1024
        %s471 = scalar_lea.vmem [#allocation10], %s470
        %p472 = pneg %p142
        %p473 = pneg %p139
        %p474 = pneg %p163
        %p475 = pneg %p160
        %p476 = pneg %p184
        %p477 = pneg %p181
        %p478 = pneg %p205
        %p479 = pneg %p202
        %p480 = pneg %p226
        %p481 = pneg %p223
        %p482 = pneg %p247
        %p483 = pneg %p244
        %p484 = pneg %p268
        %p485 = pneg %p265
        %s486 = smul.u32 128, %s27
        %p487 = scmp.eq.s32.totalorder %s27, 0
        // Predicated region
        $region85: #{tpu_custom_call.1} parent=55 // pred_check
          %p488 = pneg %p487
        $region86: #{tpu_custom_call.1} parent=55 // pred_check_branch
          %490 = sbr.rel (%p488) target = $region88
        $region87: #{tpu_custom_call.1} parent=55 // pred_region
          %491 = vst [vmem:[#allocation2] sm:$0xff] 0.0
          %492 = vst [vmem:[#allocation2 + $0x8] sm:$0xff] 0.0
          %493 = vst [vmem:[#allocation2 + $0x10] sm:$0xff] 0.0
          %494 = vst [vmem:[#allocation2 + $0x18] sm:$0xff] 0.0
        $region88: #{tpu_custom_call.1} parent=55 // pred_fallthru
          _
        %v495 = vld [vmem:[#allocation3] sm:$0xff]
        %v496 = vld [vmem:[#allocation6] sm:$0xff]
        %v497 = vld [vmem:[%s418] sm:$0xff]
        %v498 = vld [vmem:[%s427] sm:$0xff]
        %500 = vset.pattern.permute.xlu0 0
        %501 = vperm.xlu0 %500, %v497
        %v502 = vpop.permute.xlu0 %501
        %v504 = vmul.f32 %v502, %v495
        %506 = vset.pattern.permute.xlu0 0
        %507 = vperm.xlu0 %506, %v498
        %v508 = vpop.permute.xlu0 %507
        %v510 = vmul.f32 %v508, %v496
        %v511 = vsub.f32 %v504, %v510
        %v512 = vmul.f32 %v502, %v496
        %v513 = vmul.f32 %v508, %v495
        %v514 = vadd.f32 %v512, %v513
        %515 = vset.pattern.permute.xlu0 1
        %516 = vperm.xlu0 %515, %v497
        %v517 = vpop.permute.xlu0 %516
        %v519 = vmul.f32 %v517, %v495
        %520 = vset.pattern.permute.xlu0 1
        %521 = vperm.xlu0 %520, %v498
        %v522 = vpop.permute.xlu0 %521
        %v524 = vmul.f32 %v522, %v496
        %v525 = vsub.f32 %v519, %v524
        %v526 = vmul.f32 %v517, %v496
        %v527 = vmul.f32 %v522, %v495
        %v528 = vadd.f32 %v526, %v527
        %529 = vset.pattern.permute.xlu0 2
        %530 = vperm.xlu0 %529, %v497
        %v531 = vpop.permute.xlu0 %530
        %v533 = vmul.f32 %v531, %v495
        %534 = vset.pattern.permute.xlu0 2
        %535 = vperm.xlu0 %534, %v498
        %v536 = vpop.permute.xlu0 %535
        %v538 = vmul.f32 %v536, %v496
        %v539 = vsub.f32 %v533, %v538
        %v540 = vmul.f32 %v531, %v496
        %v541 = vmul.f32 %v536, %v495
        %v542 = vadd.f32 %v540, %v541
        %543 = vset.pattern.permute.xlu0 3
        %544 = vperm.xlu0 %543, %v497
        %v545 = vpop.permute.xlu0 %544
        %v547 = vmul.f32 %v545, %v495
        %548 = vset.pattern.permute.xlu0 3
        %549 = vperm.xlu0 %548, %v498
        %v550 = vpop.permute.xlu0 %549
        %v552 = vmul.f32 %v550, %v496
        %v553 = vsub.f32 %v547, %v552
        %v554 = vmul.f32 %v545, %v496
        %v555 = vmul.f32 %v550, %v495
        %v556 = vadd.f32 %v554, %v555
        %557 = vset.pattern.permute.xlu0 4
        %558 = vperm.xlu0 %557, %v497
        %v559 = vpop.permute.xlu0 %558
        %v561 = vmul.f32 %v559, %v495
        %562 = vset.pattern.permute.xlu0 4
        %563 = vperm.xlu0 %562, %v498
        %v564 = vpop.permute.xlu0 %563
        %v566 = vmul.f32 %v564, %v496
        %v567 = vsub.f32 %v561, %v566
        %v568 = vmul.f32 %v559, %v496
        %v569 = vmul.f32 %v564, %v495
        %v570 = vadd.f32 %v568, %v569
        %571 = vset.pattern.permute.xlu0 5
        %572 = vperm.xlu0 %571, %v497
        %v573 = vpop.permute.xlu0 %572
        %v575 = vmul.f32 %v573, %v495
        %576 = vset.pattern.permute.xlu0 5
        %577 = vperm.xlu0 %576, %v498
        %v578 = vpop.permute.xlu0 %577
        %v580 = vmul.f32 %v578, %v496
        %v581 = vsub.f32 %v575, %v580
        %v582 = vmul.f32 %v573, %v496
        %v583 = vmul.f32 %v578, %v495
        %v584 = vadd.f32 %v582, %v583
        %585 = vset.pattern.permute.xlu0 6
        %586 = vperm.xlu0 %585, %v497
        %v587 = vpop.permute.xlu0 %586
        %v589 = vmul.f32 %v587, %v495
        %590 = vset.pattern.permute.xlu0 6
        %591 = vperm.xlu0 %590, %v498
        %v592 = vpop.permute.xlu0 %591
        %v594 = vmul.f32 %v592, %v496
        %v595 = vsub.f32 %v589, %v594
        %v596 = vmul.f32 %v587, %v496
        %v597 = vmul.f32 %v592, %v495
        %v598 = vadd.f32 %v596, %v597
        %599 = vset.pattern.permute.xlu0 7
        %600 = vperm.xlu0 %599, %v497
        %v601 = vpop.permute.xlu0 %600
        %v603 = vmul.f32 %v601, %v495
        %604 = vset.pattern.permute.xlu0 7
        %605 = vperm.xlu0 %604, %v498
        %v606 = vpop.permute.xlu0 %605
        %v608 = vmul.f32 %v606, %v496
        %v609 = vsub.f32 %v603, %v608
        %v610 = vmul.f32 %v601, %v496
        %v611 = vmul.f32 %v606, %v495
        %v612 = vadd.f32 %v610, %v611
        %v613 = vpack.c.bf16 %v514, %v511
        %v614 = vpack.c.bf16 %v528, %v525
        %v615 = vpack.c.bf16 %v542, %v539
        %v616 = vpack.c.bf16 %v556, %v553
        %v617 = vpack.c.bf16 %v570, %v567
        %v618 = vpack.c.bf16 %v584, %v581
        %v619 = vpack.c.bf16 %v598, %v595
        %v620 = vpack.c.bf16 %v612, %v609
        %v621 = vld [vmem:[#allocation2] sm:$0xff]
        %v622 = vld [vmem:[#allocation2 + $0x8] sm:$0xff]
        %v623 = vld [vmem:[#allocation2 + $0x10] sm:$0xff]
        %v624 = vld [vmem:[#allocation2 + $0x18] sm:$0xff]
        %v625 = vld [vmem:[%s436] sm:$0xff]
        %v626 = vld [vmem:[%s436 + $0x8] sm:$0xff]
        %v627 = vld [vmem:[%s436 + $0x10] sm:$0xff]
        %v628 = vld [vmem:[%s436 + $0x18] sm:$0xff]
        %v629 = vld [vmem:[%s436 + $0x20] sm:$0xff]
        %v630 = vld [vmem:[%s436 + $0x28] sm:$0xff]
        %v631 = vld [vmem:[%s436 + $0x30] sm:$0xff]
        %v632 = vld [vmem:[%s436 + $0x38] sm:$0xff]
        %v633 = vld [vmem:[%s436 + $0x40] sm:$0xff]
        %v634 = vld [vmem:[%s436 + $0x48] sm:$0xff]
        %v635 = vld [vmem:[%s436 + $0x50] sm:$0xff]
        %v636 = vld [vmem:[%s436 + $0x58] sm:$0xff]
        %v637 = vld [vmem:[%s436 + $0x60] sm:$0xff]
        %v638 = vld [vmem:[%s436 + $0x68] sm:$0xff]
        %v639 = vld [vmem:[%s436 + $0x70] sm:$0xff]
        %v640 = vld [vmem:[%s436 + $0x78] sm:$0xff]
        %v641 = vld [vmem:[%s436 + $0x80] sm:$0xff]
        %v642 = vld [vmem:[%s436 + $0x88] sm:$0xff]
        %v643 = vld [vmem:[%s436 + $0x90] sm:$0xff]
        %v644 = vld [vmem:[%s436 + $0x98] sm:$0xff]
        %v645 = vld [vmem:[%s436 + $0xa0] sm:$0xff]
        %v646 = vld [vmem:[%s436 + $0xa8] sm:$0xff]
        %v647 = vld [vmem:[%s436 + $0xb0] sm:$0xff]
        %v648 = vld [vmem:[%s436 + $0xb8] sm:$0xff]
        %v649 = vld [vmem:[%s436 + $0xc0] sm:$0xff]
        %v650 = vld [vmem:[%s436 + $0xc8] sm:$0xff]
        %v651 = vld [vmem:[%s436 + $0xd0] sm:$0xff]
        %v652 = vld [vmem:[%s436 + $0xd8] sm:$0xff]
        %v653 = vld [vmem:[%s436 + $0xe0] sm:$0xff]
        %v654 = vld [vmem:[%s436 + $0xe8] sm:$0xff]
        %v655 = vld [vmem:[%s436 + $0xf0] sm:$0xff]
        %v656 = vld [vmem:[%s436 + $0xf8] sm:$0xff]
        %v657 = vld [vmem:[%s436 + $0x100] sm:$0xff]
        %v658 = vld [vmem:[%s436 + $0x108] sm:$0xff]
        %v659 = vld [vmem:[%s436 + $0x110] sm:$0xff]
        %v660 = vld [vmem:[%s436 + $0x118] sm:$0xff]
        %v661 = vld [vmem:[%s436 + $0x120] sm:$0xff]
        %v662 = vld [vmem:[%s436 + $0x128] sm:$0xff]
        %v663 = vld [vmem:[%s436 + $0x130] sm:$0xff]
        %v664 = vld [vmem:[%s436 + $0x138] sm:$0xff]
        %v665 = vld [vmem:[%s436 + $0x140] sm:$0xff]
        %v666 = vld [vmem:[%s436 + $0x148] sm:$0xff]
        %v667 = vld [vmem:[%s436 + $0x150] sm:$0xff]
        %v668 = vld [vmem:[%s436 + $0x158] sm:$0xff]
        %v669 = vld [vmem:[%s436 + $0x160] sm:$0xff]
        %v670 = vld [vmem:[%s436 + $0x168] sm:$0xff]
        %v671 = vld [vmem:[%s436 + $0x170] sm:$0xff]
        %v672 = vld [vmem:[%s436 + $0x178] sm:$0xff]
        %v673 = vld [vmem:[%s436 + $0x180] sm:$0xff]
        %v674 = vld [vmem:[%s436 + $0x188] sm:$0xff]
        %v675 = vld [vmem:[%s436 + $0x190] sm:$0xff]
        %v676 = vld [vmem:[%s436 + $0x198] sm:$0xff]
        %v677 = vld [vmem:[%s436 + $0x1a0] sm:$0xff]
        %v678 = vld [vmem:[%s436 + $0x1a8] sm:$0xff]
        %v679 = vld [vmem:[%s436 + $0x1b0] sm:$0xff]
        %v680 = vld [vmem:[%s436 + $0x1b8] sm:$0xff]
        %v681 = vld [vmem:[%s436 + $0x1c0] sm:$0xff]
        %v682 = vld [vmem:[%s436 + $0x1c8] sm:$0xff]
        %v683 = vld [vmem:[%s436 + $0x1d0] sm:$0xff]
        %v684 = vld [vmem:[%s436 + $0x1d8] sm:$0xff]
        %v685 = vld [vmem:[%s436 + $0x1e0] sm:$0xff]
        %v686 = vld [vmem:[%s436 + $0x1e8] sm:$0xff]
        %v687 = vld [vmem:[%s436 + $0x1f0] sm:$0xff]
        %v688 = vld [vmem:[%s436 + $0x1f8] sm:$0xff]
        %v689 = vld [vmem:[%s436 + $0x200] sm:$0xff]
        %v690 = vld [vmem:[%s436 + $0x208] sm:$0xff]
        %v691 = vld [vmem:[%s436 + $0x210] sm:$0xff]
        %v692 = vld [vmem:[%s436 + $0x218] sm:$0xff]
        %v693 = vld [vmem:[%s436 + $0x220] sm:$0xff]
        %v694 = vld [vmem:[%s436 + $0x228] sm:$0xff]
        %v695 = vld [vmem:[%s436 + $0x230] sm:$0xff]
        %v696 = vld [vmem:[%s436 + $0x238] sm:$0xff]
        %v697 = vld [vmem:[%s436 + $0x240] sm:$0xff]
        %v698 = vld [vmem:[%s436 + $0x248] sm:$0xff]
        %v699 = vld [vmem:[%s436 + $0x250] sm:$0xff]
        %v700 = vld [vmem:[%s436 + $0x258] sm:$0xff]
        %v701 = vld [vmem:[%s436 + $0x260] sm:$0xff]
        %v702 = vld [vmem:[%s436 + $0x268] sm:$0xff]
        %v703 = vld [vmem:[%s436 + $0x270] sm:$0xff]
        %v704 = vld [vmem:[%s436 + $0x278] sm:$0xff]
        %v705 = vld [vmem:[%s436 + $0x280] sm:$0xff]
        %v706 = vld [vmem:[%s436 + $0x288] sm:$0xff]
        %v707 = vld [vmem:[%s436 + $0x290] sm:$0xff]
        %v708 = vld [vmem:[%s436 + $0x298] sm:$0xff]
        %v709 = vld [vmem:[%s436 + $0x2a0] sm:$0xff]
        %v710 = vld [vmem:[%s436 + $0x2a8] sm:$0xff]
        %v711 = vld [vmem:[%s436 + $0x2b0] sm:$0xff]
        %v712 = vld [vmem:[%s436 + $0x2b8] sm:$0xff]
        %v713 = vld [vmem:[%s436 + $0x2c0] sm:$0xff]
        %v714 = vld [vmem:[%s436 + $0x2c8] sm:$0xff]
        %v715 = vld [vmem:[%s436 + $0x2d0] sm:$0xff]
        %v716 = vld [vmem:[%s436 + $0x2d8] sm:$0xff]
        %v717 = vld [vmem:[%s436 + $0x2e0] sm:$0xff]
        %v718 = vld [vmem:[%s436 + $0x2e8] sm:$0xff]
        %v719 = vld [vmem:[%s436 + $0x2f0] sm:$0xff]
        %v720 = vld [vmem:[%s436 + $0x2f8] sm:$0xff]
        %v721 = vld [vmem:[%s436 + $0x300] sm:$0xff]
        %v722 = vld [vmem:[%s436 + $0x308] sm:$0xff]
        %v723 = vld [vmem:[%s436 + $0x310] sm:$0xff]
        %v724 = vld [vmem:[%s436 + $0x318] sm:$0xff]
        %v725 = vld [vmem:[%s436 + $0x320] sm:$0xff]
        %v726 = vld [vmem:[%s436 + $0x328] sm:$0xff]
        %v727 = vld [vmem:[%s436 + $0x330] sm:$0xff]
        %v728 = vld [vmem:[%s436 + $0x338] sm:$0xff]
        %v729 = vld [vmem:[%s436 + $0x340] sm:$0xff]
        %v730 = vld [vmem:[%s436 + $0x348] sm:$0xff]
        %v731 = vld [vmem:[%s436 + $0x350] sm:$0xff]
        %v732 = vld [vmem:[%s436 + $0x358] sm:$0xff]
        %v733 = vld [vmem:[%s436 + $0x360] sm:$0xff]
        %v734 = vld [vmem:[%s436 + $0x368] sm:$0xff]
        %v735 = vld [vmem:[%s436 + $0x370] sm:$0xff]
        %v736 = vld [vmem:[%s436 + $0x378] sm:$0xff]
        %v737 = vld [vmem:[%s436 + $0x380] sm:$0xff]
        %v738 = vld [vmem:[%s436 + $0x388] sm:$0xff]
        %v739 = vld [vmem:[%s436 + $0x390] sm:$0xff]
        %v740 = vld [vmem:[%s436 + $0x398] sm:$0xff]
        %v741 = vld [vmem:[%s436 + $0x3a0] sm:$0xff]
        %v742 = vld [vmem:[%s436 + $0x3a8] sm:$0xff]
        %v743 = vld [vmem:[%s436 + $0x3b0] sm:$0xff]
        %v744 = vld [vmem:[%s436 + $0x3b8] sm:$0xff]
        %v745 = vld [vmem:[%s436 + $0x3c0] sm:$0xff]
        %v746 = vld [vmem:[%s436 + $0x3c8] sm:$0xff]
        %v747 = vld [vmem:[%s436 + $0x3d0] sm:$0xff]
        %v748 = vld [vmem:[%s436 + $0x3d8] sm:$0xff]
        %v749 = vld [vmem:[%s436 + $0x3e0] sm:$0xff]
        %v750 = vld [vmem:[%s436 + $0x3e8] sm:$0xff]
        %v751 = vld [vmem:[%s436 + $0x3f0] sm:$0xff]
        %v752 = vld [vmem:[%s436 + $0x3f8] sm:$0xff]
        %v881 = vunpack.c.l.b16 %v625
        %v882 = vunpack.c.h.b16 %v625
        %v883 = vunpack.c.l.b16 %v626
        %v884 = vunpack.c.h.b16 %v626
        %v885 = vunpack.c.l.b16 %v627
        %v886 = vunpack.c.h.b16 %v627
        %v887 = vunpack.c.l.b16 %v628
        %v888 = vunpack.c.h.b16 %v628
        %v889 = vunpack.c.l.b16 %v629
        %v890 = vunpack.c.h.b16 %v629
        %v891 = vunpack.c.l.b16 %v630
        %v892 = vunpack.c.h.b16 %v630
        %v893 = vunpack.c.l.b16 %v631
        %v894 = vunpack.c.h.b16 %v631
        %v895 = vunpack.c.l.b16 %v632
        %v896 = vunpack.c.h.b16 %v632
        %v897 = vunpack.c.l.b16 %v633
        %v898 = vunpack.c.h.b16 %v633
        %v899 = vunpack.c.l.b16 %v634
        %v900 = vunpack.c.h.b16 %v634
        %v901 = vunpack.c.l.b16 %v635
        %v902 = vunpack.c.h.b16 %v635
        %v903 = vunpack.c.l.b16 %v636
        %v904 = vunpack.c.h.b16 %v636
        %v905 = vunpack.c.l.b16 %v637
        %v906 = vunpack.c.h.b16 %v637
        %v907 = vunpack.c.l.b16 %v638
        %v908 = vunpack.c.h.b16 %v638
        %v909 = vunpack.c.l.b16 %v639
        %v910 = vunpack.c.h.b16 %v639
        %v911 = vunpack.c.l.b16 %v640
        %v912 = vunpack.c.h.b16 %v640
        %v913 = vunpack.c.l.b16 %v641
        %v914 = vunpack.c.h.b16 %v641
        %v915 = vunpack.c.l.b16 %v642
        %v916 = vunpack.c.h.b16 %v642
        %v917 = vunpack.c.l.b16 %v643
        %v918 = vunpack.c.h.b16 %v643
        %v919 = vunpack.c.l.b16 %v644
        %v920 = vunpack.c.h.b16 %v644
        %v921 = vunpack.c.l.b16 %v645
        %v922 = vunpack.c.h.b16 %v645
        %v923 = vunpack.c.l.b16 %v646
        %v924 = vunpack.c.h.b16 %v646
        %v925 = vunpack.c.l.b16 %v647
        %v926 = vunpack.c.h.b16 %v647
        %v927 = vunpack.c.l.b16 %v648
        %v928 = vunpack.c.h.b16 %v648
        %v929 = vunpack.c.l.b16 %v649
        %v930 = vunpack.c.h.b16 %v649
        %v931 = vunpack.c.l.b16 %v650
        %v932 = vunpack.c.h.b16 %v650
        %v933 = vunpack.c.l.b16 %v651
        %v934 = vunpack.c.h.b16 %v651
        %v935 = vunpack.c.l.b16 %v652
        %v936 = vunpack.c.h.b16 %v652
        %v937 = vunpack.c.l.b16 %v653
        %v938 = vunpack.c.h.b16 %v653
        %v939 = vunpack.c.l.b16 %v654
        %v940 = vunpack.c.h.b16 %v654
        %v941 = vunpack.c.l.b16 %v655
        %v942 = vunpack.c.h.b16 %v655
        %v943 = vunpack.c.l.b16 %v656
        %v944 = vunpack.c.h.b16 %v656
        %v945 = vunpack.c.l.b16 %v657
        %v946 = vunpack.c.h.b16 %v657
        %v947 = vunpack.c.l.b16 %v658
        %v948 = vunpack.c.h.b16 %v658
        %v949 = vunpack.c.l.b16 %v659
        %v950 = vunpack.c.h.b16 %v659
        %v951 = vunpack.c.l.b16 %v660
        %v952 = vunpack.c.h.b16 %v660
        %v953 = vunpack.c.l.b16 %v661
        %v954 = vunpack.c.h.b16 %v661
        %v955 = vunpack.c.l.b16 %v662
        %v956 = vunpack.c.h.b16 %v662
        %v957 = vunpack.c.l.b16 %v663
        %v958 = vunpack.c.h.b16 %v663
        %v959 = vunpack.c.l.b16 %v664
        %v960 = vunpack.c.h.b16 %v664
        %v961 = vunpack.c.l.b16 %v665
        %v962 = vunpack.c.h.b16 %v665
        %v963 = vunpack.c.l.b16 %v666
        %v964 = vunpack.c.h.b16 %v666
        %v965 = vunpack.c.l.b16 %v667
        %v966 = vunpack.c.h.b16 %v667
        %v967 = vunpack.c.l.b16 %v668
        %v968 = vunpack.c.h.b16 %v668
        %v969 = vunpack.c.l.b16 %v669
        %v970 = vunpack.c.h.b16 %v669
        %v971 = vunpack.c.l.b16 %v670
        %v972 = vunpack.c.h.b16 %v670
        %v973 = vunpack.c.l.b16 %v671
        %v974 = vunpack.c.h.b16 %v671
        %v975 = vunpack.c.l.b16 %v672
        %v976 = vunpack.c.h.b16 %v672
        %v977 = vunpack.c.l.b16 %v673
        %v978 = vunpack.c.h.b16 %v673
        %v979 = vunpack.c.l.b16 %v674
        %v980 = vunpack.c.h.b16 %v674
        %v981 = vunpack.c.l.b16 %v675
        %v982 = vunpack.c.h.b16 %v675
        %v983 = vunpack.c.l.b16 %v676
        %v984 = vunpack.c.h.b16 %v676
        %v985 = vunpack.c.l.b16 %v677
        %v986 = vunpack.c.h.b16 %v677
        %v987 = vunpack.c.l.b16 %v678
        %v988 = vunpack.c.h.b16 %v678
        %v989 = vunpack.c.l.b16 %v679
        %v990 = vunpack.c.h.b16 %v679
        %v991 = vunpack.c.l.b16 %v680
        %v992 = vunpack.c.h.b16 %v680
        %v993 = vunpack.c.l.b16 %v681
        %v994 = vunpack.c.h.b16 %v681
        %v995 = vunpack.c.l.b16 %v682
        %v996 = vunpack.c.h.b16 %v682
        %v997 = vunpack.c.l.b16 %v683
        %v998 = vunpack.c.h.b16 %v683
        %v999 = vunpack.c.l.b16 %v684
        %v1000 = vunpack.c.h.b16 %v684
        %v1001 = vunpack.c.l.b16 %v685
        %v1002 = vunpack.c.h.b16 %v685
        %v1003 = vunpack.c.l.b16 %v686
        %v1004 = vunpack.c.h.b16 %v686
        %v1005 = vunpack.c.l.b16 %v687
        %v1006 = vunpack.c.h.b16 %v687
        %v1007 = vunpack.c.l.b16 %v688
        %v1008 = vunpack.c.h.b16 %v688
        %v1009 = vunpack.c.l.b16 %v689
        %v1010 = vunpack.c.h.b16 %v689
        %v1011 = vunpack.c.l.b16 %v690
        %v1012 = vunpack.c.h.b16 %v690
        %v1013 = vunpack.c.l.b16 %v691
        %v1014 = vunpack.c.h.b16 %v691
        %v1015 = vunpack.c.l.b16 %v692
        %v1016 = vunpack.c.h.b16 %v692
        %v1017 = vunpack.c.l.b16 %v693
        %v1018 = vunpack.c.h.b16 %v693
        %v1019 = vunpack.c.l.b16 %v694
        %v1020 = vunpack.c.h.b16 %v694
        %v1021 = vunpack.c.l.b16 %v695
        %v1022 = vunpack.c.h.b16 %v695
        %v1023 = vunpack.c.l.b16 %v696
        %v1024 = vunpack.c.h.b16 %v696
        %v1025 = vunpack.c.l.b16 %v697
        %v1026 = vunpack.c.h.b16 %v697
        %v1027 = vunpack.c.l.b16 %v698
        %v1028 = vunpack.c.h.b16 %v698
        %v1029 = vunpack.c.l.b16 %v699
        %v1030 = vunpack.c.h.b16 %v699
        %v1031 = vunpack.c.l.b16 %v700
        %v1032 = vunpack.c.h.b16 %v700
        %v1033 = vunpack.c.l.b16 %v701
        %v1034 = vunpack.c.h.b16 %v701
        %v1035 = vunpack.c.l.b16 %v702
        %v1036 = vunpack.c.h.b16 %v702
        %v1037 = vunpack.c.l.b16 %v703
        %v1038 = vunpack.c.h.b16 %v703
        %v1039 = vunpack.c.l.b16 %v704
        %v1040 = vunpack.c.h.b16 %v704
        %v1041 = vunpack.c.l.b16 %v705
        %v1042 = vunpack.c.h.b16 %v705
        %v1043 = vunpack.c.l.b16 %v706
        %v1044 = vunpack.c.h.b16 %v706
        %v1045 = vunpack.c.l.b16 %v707
        %v1046 = vunpack.c.h.b16 %v707
        %v1047 = vunpack.c.l.b16 %v708
        %v1048 = vunpack.c.h.b16 %v708
        %v1049 = vunpack.c.l.b16 %v709
        %v1050 = vunpack.c.h.b16 %v709
        %v1051 = vunpack.c.l.b16 %v710
        %v1052 = vunpack.c.h.b16 %v710
        %v1053 = vunpack.c.l.b16 %v711
        %v1054 = vunpack.c.h.b16 %v711
        %v1055 = vunpack.c.l.b16 %v712
        %v1056 = vunpack.c.h.b16 %v712
        %v1057 = vunpack.c.l.b16 %v713
        %v1058 = vunpack.c.h.b16 %v713
        %v1059 = vunpack.c.l.b16 %v714
        %v1060 = vunpack.c.h.b16 %v714
        %v1061 = vunpack.c.l.b16 %v715
        %v1062 = vunpack.c.h.b16 %v715
        %v1063 = vunpack.c.l.b16 %v716
        %v1064 = vunpack.c.h.b16 %v716
        %v1065 = vunpack.c.l.b16 %v717
        %v1066 = vunpack.c.h.b16 %v717
        %v1067 = vunpack.c.l.b16 %v718
        %v1068 = vunpack.c.h.b16 %v718
        %v1069 = vunpack.c.l.b16 %v719
        %v1070 = vunpack.c.h.b16 %v719
        %v1071 = vunpack.c.l.b16 %v720
        %v1072 = vunpack.c.h.b16 %v720
        %v1073 = vunpack.c.l.b16 %v721
        %v1074 = vunpack.c.h.b16 %v721
        %v1075 = vunpack.c.l.b16 %v722
        %v1076 = vunpack.c.h.b16 %v722
        %v1077 = vunpack.c.l.b16 %v723
        %v1078 = vunpack.c.h.b16 %v723
        %v1079 = vunpack.c.l.b16 %v724
        %v1080 = vunpack.c.h.b16 %v724
        %v1081 = vunpack.c.l.b16 %v725
        %v1082 = vunpack.c.h.b16 %v725
        %v1083 = vunpack.c.l.b16 %v726
        %v1084 = vunpack.c.h.b16 %v726
        %v1085 = vunpack.c.l.b16 %v727
        %v1086 = vunpack.c.h.b16 %v727
        %v1087 = vunpack.c.l.b16 %v728
        %v1088 = vunpack.c.h.b16 %v728
        %v1089 = vunpack.c.l.b16 %v729
        %v1090 = vunpack.c.h.b16 %v729
        %v1091 = vunpack.c.l.b16 %v730
        %v1092 = vunpack.c.h.b16 %v730
        %v1093 = vunpack.c.l.b16 %v731
        %v1094 = vunpack.c.h.b16 %v731
        %v1095 = vunpack.c.l.b16 %v732
        %v1096 = vunpack.c.h.b16 %v732
        %v1097 = vunpack.c.l.b16 %v733
        %v1098 = vunpack.c.h.b16 %v733
        %v1099 = vunpack.c.l.b16 %v734
        %v1100 = vunpack.c.h.b16 %v734
        %v1101 = vunpack.c.l.b16 %v735
        %v1102 = vunpack.c.h.b16 %v735
        %v1103 = vunpack.c.l.b16 %v736
        %v1104 = vunpack.c.h.b16 %v736
        %v1105 = vunpack.c.l.b16 %v737
        %v1106 = vunpack.c.h.b16 %v737
        %v1107 = vunpack.c.l.b16 %v738
        %v1108 = vunpack.c.h.b16 %v738
        %v1109 = vunpack.c.l.b16 %v739
        %v1110 = vunpack.c.h.b16 %v739
        %v1111 = vunpack.c.l.b16 %v740
        %v1112 = vunpack.c.h.b16 %v740
        %v1113 = vunpack.c.l.b16 %v741
        %v1114 = vunpack.c.h.b16 %v741
        %v1115 = vunpack.c.l.b16 %v742
        %v1116 = vunpack.c.h.b16 %v742
        %v1117 = vunpack.c.l.b16 %v743
        %v1118 = vunpack.c.h.b16 %v743
        %v1119 = vunpack.c.l.b16 %v744
        %v1120 = vunpack.c.h.b16 %v744
        %v1121 = vunpack.c.l.b16 %v745
        %v1122 = vunpack.c.h.b16 %v745
        %v1123 = vunpack.c.l.b16 %v746
        %v1124 = vunpack.c.h.b16 %v746
        %v1125 = vunpack.c.l.b16 %v747
        %v1126 = vunpack.c.h.b16 %v747
        %v1127 = vunpack.c.l.b16 %v748
        %v1128 = vunpack.c.h.b16 %v748
        %v1129 = vunpack.c.l.b16 %v749
        %v1130 = vunpack.c.h.b16 %v749
        %v1131 = vunpack.c.l.b16 %v750
        %v1132 = vunpack.c.h.b16 %v750
        %v1133 = vunpack.c.l.b16 %v751
        %v1134 = vunpack.c.h.b16 %v751
        %v1135 = vunpack.c.l.b16 %v752
        %v1136 = vunpack.c.h.b16 %v752
        %v1137 = vpack.c.b16 %v883, %v881
        %v1138 = vpack.c.b16 %v884, %v882
        %v1139 = vpack.c.b16 %v887, %v885
        %v1140 = vpack.c.b16 %v888, %v886
        %v1141 = vpack.c.b16 %v891, %v889
        %v1142 = vpack.c.b16 %v892, %v890
        %v1143 = vpack.c.b16 %v895, %v893
        %v1144 = vpack.c.b16 %v896, %v894
        %v1145 = vpack.c.b16 %v899, %v897
        %v1146 = vpack.c.b16 %v900, %v898
        %v1147 = vpack.c.b16 %v903, %v901
        %v1148 = vpack.c.b16 %v904, %v902
        %v1149 = vpack.c.b16 %v907, %v905
        %v1150 = vpack.c.b16 %v908, %v906
        %v1151 = vpack.c.b16 %v911, %v909
        %v1152 = vpack.c.b16 %v912, %v910
        %v1153 = vpack.c.b16 %v915, %v913
        %v1154 = vpack.c.b16 %v916, %v914
        %v1155 = vpack.c.b16 %v919, %v917
        %v1156 = vpack.c.b16 %v920, %v918
        %v1157 = vpack.c.b16 %v923, %v921
        %v1158 = vpack.c.b16 %v924, %v922
        %v1159 = vpack.c.b16 %v927, %v925
        %v1160 = vpack.c.b16 %v928, %v926
        %v1161 = vpack.c.b16 %v931, %v929
        %v1162 = vpack.c.b16 %v932, %v930
        %v1163 = vpack.c.b16 %v935, %v933
        %v1164 = vpack.c.b16 %v936, %v934
        %v1165 = vpack.c.b16 %v939, %v937
        %v1166 = vpack.c.b16 %v940, %v938
        %v1167 = vpack.c.b16 %v943, %v941
        %v1168 = vpack.c.b16 %v944, %v942
        %v1169 = vpack.c.b16 %v947, %v945
        %v1170 = vpack.c.b16 %v948, %v946
        %v1171 = vpack.c.b16 %v951, %v949
        %v1172 = vpack.c.b16 %v952, %v950
        %v1173 = vpack.c.b16 %v955, %v953
        %v1174 = vpack.c.b16 %v956, %v954
        %v1175 = vpack.c.b16 %v959, %v957
        %v1176 = vpack.c.b16 %v960, %v958
        %v1177 = vpack.c.b16 %v963, %v961
        %v1178 = vpack.c.b16 %v964, %v962
        %v1179 = vpack.c.b16 %v967, %v965
        %v1180 = vpack.c.b16 %v968, %v966
        %v1181 = vpack.c.b16 %v971, %v969
        %v1182 = vpack.c.b16 %v972, %v970
        %v1183 = vpack.c.b16 %v975, %v973
        %v1184 = vpack.c.b16 %v976, %v974
        %v1185 = vpack.c.b16 %v979, %v977
        %v1186 = vpack.c.b16 %v980, %v978
        %v1187 = vpack.c.b16 %v983, %v981
        %v1188 = vpack.c.b16 %v984, %v982
        %v1189 = vpack.c.b16 %v987, %v985
        %v1190 = vpack.c.b16 %v988, %v986
        %v1191 = vpack.c.b16 %v991, %v989
        %v1192 = vpack.c.b16 %v992, %v990
        %v1193 = vpack.c.b16 %v995, %v993
        %v1194 = vpack.c.b16 %v996, %v994
        %v1195 = vpack.c.b16 %v999, %v997
        %v1196 = vpack.c.b16 %v1000, %v998
        %v1197 = vpack.c.b16 %v1003, %v1001
        %v1198 = vpack.c.b16 %v1004, %v1002
        %v1199 = vpack.c.b16 %v1007, %v1005
        %v1200 = vpack.c.b16 %v1008, %v1006
        %v1201 = vpack.c.b16 %v1011, %v1009
        %v1202 = vpack.c.b16 %v1012, %v1010
        %v1203 = vpack.c.b16 %v1015, %v1013
        %v1204 = vpack.c.b16 %v1016, %v1014
        %v1205 = vpack.c.b16 %v1019, %v1017
        %v1206 = vpack.c.b16 %v1020, %v1018
        %v1207 = vpack.c.b16 %v1023, %v1021
        %v1208 = vpack.c.b16 %v1024, %v1022
        %v1209 = vpack.c.b16 %v1027, %v1025
        %v1210 = vpack.c.b16 %v1028, %v1026
        %v1211 = vpack.c.b16 %v1031, %v1029
        %v1212 = vpack.c.b16 %v1032, %v1030
        %v1213 = vpack.c.b16 %v1035, %v1033
        %v1214 = vpack.c.b16 %v1036, %v1034
        %v1215 = vpack.c.b16 %v1039, %v1037
        %v1216 = vpack.c.b16 %v1040, %v1038
        %v1217 = vpack.c.b16 %v1043, %v1041
        %v1218 = vpack.c.b16 %v1044, %v1042
        %v1219 = vpack.c.b16 %v1047, %v1045
        %v1220 = vpack.c.b16 %v1048, %v1046
        %v1221 = vpack.c.b16 %v1051, %v1049
        %v1222 = vpack.c.b16 %v1052, %v1050
        %v1223 = vpack.c.b16 %v1055, %v1053
        %v1224 = vpack.c.b16 %v1056, %v1054
        %v1225 = vpack.c.b16 %v1059, %v1057
        %v1226 = vpack.c.b16 %v1060, %v1058
        %v1227 = vpack.c.b16 %v1063, %v1061
        %v1228 = vpack.c.b16 %v1064, %v1062
        %v1229 = vpack.c.b16 %v1067, %v1065
        %v1230 = vpack.c.b16 %v1068, %v1066
        %v1231 = vpack.c.b16 %v1071, %v1069
        %v1232 = vpack.c.b16 %v1072, %v1070
        %v1233 = vpack.c.b16 %v1075, %v1073
        %v1234 = vpack.c.b16 %v1076, %v1074
        %v1235 = vpack.c.b16 %v1079, %v1077
        %v1236 = vpack.c.b16 %v1080, %v1078
        %v1237 = vpack.c.b16 %v1083, %v1081
        %v1238 = vpack.c.b16 %v1084, %v1082
        %v1239 = vpack.c.b16 %v1087, %v1085
        %v1240 = vpack.c.b16 %v1088, %v1086
        %v1241 = vpack.c.b16 %v1091, %v1089
        %v1242 = vpack.c.b16 %v1092, %v1090
        %v1243 = vpack.c.b16 %v1095, %v1093
        %v1244 = vpack.c.b16 %v1096, %v1094
        %v1245 = vpack.c.b16 %v1099, %v1097
        %v1246 = vpack.c.b16 %v1100, %v1098
        %v1247 = vpack.c.b16 %v1103, %v1101
        %v1248 = vpack.c.b16 %v1104, %v1102
        %v1249 = vpack.c.b16 %v1107, %v1105
        %v1250 = vpack.c.b16 %v1108, %v1106
        %v1251 = vpack.c.b16 %v1111, %v1109
        %v1252 = vpack.c.b16 %v1112, %v1110
        %v1253 = vpack.c.b16 %v1115, %v1113
        %v1254 = vpack.c.b16 %v1116, %v1114
        %v1255 = vpack.c.b16 %v1119, %v1117
        %v1256 = vpack.c.b16 %v1120, %v1118
        %v1257 = vpack.c.b16 %v1123, %v1121
        %v1258 = vpack.c.b16 %v1124, %v1122
        %v1259 = vpack.c.b16 %v1127, %v1125
        %v1260 = vpack.c.b16 %v1128, %v1126
        %v1261 = vpack.c.b16 %v1131, %v1129
        %v1262 = vpack.c.b16 %v1132, %v1130
        %v1263 = vpack.c.b16 %v1135, %v1133
        %v1264 = vpack.c.b16 %v1136, %v1134
        %1393 = vmatprep.subr.bf16.mxu0 %v1152
        %1394 = vmatpush1.bf16.msra.mxu0 %v1151
        %1395 = vmatprep.subr.bf16.mxu0 %v1150
        %1396 = vmatpush1.bf16.msra.mxu0 %v1149
        %1397 = vmatprep.subr.bf16.mxu0 %v1148
        %1398 = vmatpush1.bf16.msra.mxu0 %v1147
        %1399 = vmatprep.subr.bf16.mxu0 %v1146
        %1400 = vmatpush1.bf16.msra.mxu0 %v1145
        %1401 = vmatprep.subr.bf16.mxu0 %v1144
        %1402 = vmatpush1.bf16.msra.mxu0 %v1143
        %1403 = vmatprep.subr.bf16.mxu0 %v1142
        %1404 = vmatpush1.bf16.msra.mxu0 %v1141
        %1405 = vmatprep.subr.bf16.mxu0 %v1140
        %1406 = vmatpush1.bf16.msra.mxu0 %v1139
        %1407 = vmatprep.subr.bf16.mxu0 %v1138
        %1408 = vmatpush1.bf16.msra.mxu0 %v1137
        %1409 = vmatprep.subr.bf16.mxu0 %v1168
        %1410 = vmatpush2.bf16.msra.mxu0 %v1167
        %1411 = vmatprep.subr.bf16.mxu0 %v1166
        %1412 = vmatpush2.bf16.msra.mxu0 %v1165
        %1413 = vmatprep.subr.bf16.mxu0 %v1164
        %1414 = vmatpush2.bf16.msra.mxu0 %v1163
        %1415 = vmatprep.subr.bf16.mxu0 %v1162
        %1416 = vmatpush2.bf16.msra.mxu0 %v1161
        %1417 = vmatprep.subr.bf16.mxu0 %v1160
        %1418 = vmatpush2.bf16.msra.mxu0 %v1159
        %1419 = vmatprep.subr.bf16.mxu0 %v1158
        %1420 = vmatpush2.bf16.msra.mxu0 %v1157
        %1421 = vmatprep.subr.bf16.mxu0 %v1156
        %1422 = vmatpush2.bf16.msra.mxu0 %v1155
        %1423 = vmatprep.subr.bf16.mxu0 %v1154
        %1424 = vmatpush2.bf16.msra.mxu0 %v1153
        %1425 = vmatprep.mubr.bf16.mxu0 %v614
        %1426 = vmatmul.mubr.bf16.gmra.mxu0 %v613
        %v1427 = vpop.f32.mrf.mxu0
        %v1428 = vadd.f32 0.0, %v1427
        %v1429 = vpop.f32.mrf.mxu0
        %v1430 = vadd.f32 0.0, %v1429
        %v1431 = vpop.f32.mrf.mxu0
        %v1432 = vadd.f32 0.0, %v1431
        %v1433 = vpop.f32.mrf.mxu0
        %v1434 = vadd.f32 0.0, %v1433
        %1435 = vdwg.mxu0
        %1436 = vmatprep.subr.bf16.mxu0 %v1184
        %1437 = vmatpush1.bf16.msra.mxu0 %v1183
        %1438 = vmatprep.subr.bf16.mxu0 %v1182
        %1439 = vmatpush1.bf16.msra.mxu0 %v1181
        %1440 = vmatprep.subr.bf16.mxu0 %v1180
        %1441 = vmatpush1.bf16.msra.mxu0 %v1179
        %1442 = vmatprep.subr.bf16.mxu0 %v1178
        %1443 = vmatpush1.bf16.msra.mxu0 %v1177
        %1444 = vmatprep.subr.bf16.mxu0 %v1176
        %1445 = vmatpush1.bf16.msra.mxu0 %v1175
        %1446 = vmatprep.subr.bf16.mxu0 %v1174
        %1447 = vmatpush1.bf16.msra.mxu0 %v1173
        %1448 = vmatprep.subr.bf16.mxu0 %v1172
        %1449 = vmatpush1.bf16.msra.mxu0 %v1171
        %1450 = vmatprep.subr.bf16.mxu0 %v1170
        %1451 = vmatpush1.bf16.msra.mxu0 %v1169
        %1452 = vmatprep.subr.bf16.mxu0 %v1200
        %1453 = vmatpush2.bf16.msra.mxu0 %v1199
        %1454 = vmatprep.subr.bf16.mxu0 %v1198
        %1455 = vmatpush2.bf16.msra.mxu0 %v1197
        %1456 = vmatprep.subr.bf16.mxu0 %v1196
        %1457 = vmatpush2.bf16.msra.mxu0 %v1195
        %1458 = vmatprep.subr.bf16.mxu0 %v1194
        %1459 = vmatpush2.bf16.msra.mxu0 %v1193
        %1460 = vmatprep.subr.bf16.mxu0 %v1192
        %1461 = vmatpush2.bf16.msra.mxu0 %v1191
        %1462 = vmatprep.subr.bf16.mxu0 %v1190
        %1463 = vmatpush2.bf16.msra.mxu0 %v1189
        %1464 = vmatprep.subr.bf16.mxu0 %v1188
        %1465 = vmatpush2.bf16.msra.mxu0 %v1187
        %1466 = vmatprep.subr.bf16.mxu0 %v1186
        %1467 = vmatpush2.bf16.msra.mxu0 %v1185
        %1468 = vmatprep.mubr.bf16.mxu0 %v616
        %1469 = vmatmul.mubr.bf16.gmra.mxu0 %v615
        %v1470 = vpop.f32.mrf.mxu0
        %v1471 = vadd.f32 %v1428, %v1470
        %v1472 = vpop.f32.mrf.mxu0
        %v1473 = vadd.f32 %v1430, %v1472
        %v1474 = vpop.f32.mrf.mxu0
        %v1475 = vadd.f32 %v1432, %v1474
        %v1476 = vpop.f32.mrf.mxu0
        %v1477 = vadd.f32 %v1434, %v1476
        %1478 = vdwg.mxu0
        %1479 = vmatprep.subr.bf16.mxu0 %v1216
        %1480 = vmatpush1.bf16.msra.mxu0 %v1215
        %1481 = vmatprep.subr.bf16.mxu0 %v1214
        %1482 = vmatpush1.bf16.msra.mxu0 %v1213
        %1483 = vmatprep.subr.bf16.mxu0 %v1212
        %1484 = vmatpush1.bf16.msra.mxu0 %v1211
        %1485 = vmatprep.subr.bf16.mxu0 %v1210
        %1486 = vmatpush1.bf16.msra.mxu0 %v1209
        %1487 = vmatprep.subr.bf16.mxu0 %v1208
        %1488 = vmatpush1.bf16.msra.mxu0 %v1207
        %1489 = vmatprep.subr.bf16.mxu0 %v1206
        %1490 = vmatpush1.bf16.msra.mxu0 %v1205
        %1491 = vmatprep.subr.bf16.mxu0 %v1204
        %1492 = vmatpush1.bf16.msra.mxu0 %v1203
        %1493 = vmatprep.subr.bf16.mxu0 %v1202
        %1494 = vmatpush1.bf16.msra.mxu0 %v1201
        %1495 = vmatprep.subr.bf16.mxu0 %v1232
        %1496 = vmatpush2.bf16.msra.mxu0 %v1231
        %1497 = vmatprep.subr.bf16.mxu0 %v1230
        %1498 = vmatpush2.bf16.msra.mxu0 %v1229
        %1499 = vmatprep.subr.bf16.mxu0 %v1228
        %1500 = vmatpush2.bf16.msra.mxu0 %v1227
        %1501 = vmatprep.subr.bf16.mxu0 %v1226
        %1502 = vmatpush2.bf16.msra.mxu0 %v1225
        %1503 = vmatprep.subr.bf16.mxu0 %v1224
        %1504 = vmatpush2.bf16.msra.mxu0 %v1223
        %1505 = vmatprep.subr.bf16.mxu0 %v1222
        %1506 = vmatpush2.bf16.msra.mxu0 %v1221
        %1507 = vmatprep.subr.bf16.mxu0 %v1220
        %1508 = vmatpush2.bf16.msra.mxu0 %v1219
        %1509 = vmatprep.subr.bf16.mxu0 %v1218
        %1510 = vmatpush2.bf16.msra.mxu0 %v1217
        %1511 = vmatprep.mubr.bf16.mxu0 %v618
        %1512 = vmatmul.mubr.bf16.gmra.mxu0 %v617
        %v1513 = vpop.f32.mrf.mxu0
        %v1514 = vadd.f32 %v1471, %v1513
        %v1515 = vpop.f32.mrf.mxu0
        %v1516 = vadd.f32 %v1473, %v1515
        %v1517 = vpop.f32.mrf.mxu0
        %v1518 = vadd.f32 %v1475, %v1517
        %v1519 = vpop.f32.mrf.mxu0
        %v1520 = vadd.f32 %v1477, %v1519
        %1521 = vdwg.mxu0
        %1522 = vmatprep.subr.bf16.mxu0 %v1248
        %1523 = vmatpush1.bf16.msra.mxu0 %v1247
        %1524 = vmatprep.subr.bf16.mxu0 %v1246
        %1525 = vmatpush1.bf16.msra.mxu0 %v1245
        %1526 = vmatprep.subr.bf16.mxu0 %v1244
        %1527 = vmatpush1.bf16.msra.mxu0 %v1243
        %1528 = vmatprep.subr.bf16.mxu0 %v1242
        %1529 = vmatpush1.bf16.msra.mxu0 %v1241
        %1530 = vmatprep.subr.bf16.mxu0 %v1240
        %1531 = vmatpush1.bf16.msra.mxu0 %v1239
        %1532 = vmatprep.subr.bf16.mxu0 %v1238
        %1533 = vmatpush1.bf16.msra.mxu0 %v1237
        %1534 = vmatprep.subr.bf16.mxu0 %v1236
        %1535 = vmatpush1.bf16.msra.mxu0 %v1235
        %1536 = vmatprep.subr.bf16.mxu0 %v1234
        %1537 = vmatpush1.bf16.msra.mxu0 %v1233
        %1538 = vmatprep.subr.bf16.mxu0 %v1264
        %1539 = vmatpush2.bf16.msra.mxu0 %v1263
        %1540 = vmatprep.subr.bf16.mxu0 %v1262
        %1541 = vmatpush2.bf16.msra.mxu0 %v1261
        %1542 = vmatprep.subr.bf16.mxu0 %v1260
        %1543 = vmatpush2.bf16.msra.mxu0 %v1259
        %1544 = vmatprep.subr.bf16.mxu0 %v1258
        %1545 = vmatpush2.bf16.msra.mxu0 %v1257
        %1546 = vmatprep.subr.bf16.mxu0 %v1256
        %1547 = vmatpush2.bf16.msra.mxu0 %v1255
        %1548 = vmatprep.subr.bf16.mxu0 %v1254
        %1549 = vmatpush2.bf16.msra.mxu0 %v1253
        %1550 = vmatprep.subr.bf16.mxu0 %v1252
        %1551 = vmatpush2.bf16.msra.mxu0 %v1251
        %1552 = vmatprep.subr.bf16.mxu0 %v1250
        %1553 = vmatpush2.bf16.msra.mxu0 %v1249
        %1554 = vmatprep.mubr.bf16.mxu0 %v620
        %1555 = vmatmul.mubr.bf16.gmra.mxu0 %v619
        %v1556 = vpop.f32.mrf.mxu0
        %v1557 = vadd.f32 %v1514, %v1556
        %v1558 = vpop.f32.mrf.mxu0
        %v1559 = vadd.f32 %v1516, %v1558
        %v1560 = vpop.f32.mrf.mxu0
        %v1561 = vadd.f32 %v1518, %v1560
        %v1562 = vpop.f32.mrf.mxu0
        %v1563 = vadd.f32 %v1520, %v1562
        %1564 = vdwg.mxu0
        %v1565 = vadd.f32 %v621, %v1557
        %v1566 = vadd.f32 %v622, %v1559
        %v1567 = vadd.f32 %v623, %v1561
        %v1568 = vadd.f32 %v624, %v1563
        %1569 = vst [vmem:[#allocation2] sm:$0xff] %v1565
        %1570 = vst [vmem:[#allocation2 + $0x8] sm:$0xff] %v1566
        %1571 = vst [vmem:[#allocation2 + $0x10] sm:$0xff] %v1567
        %1572 = vst [vmem:[#allocation2 + $0x18] sm:$0xff] %v1568
        %p1573 = scmp.eq.s32.totalorder %s27, 1
        // Predicated region
        $region89: #{tpu_custom_call.1} parent=55 // pred_check
          %p1574 = pneg %p1573
        $region90: #{tpu_custom_call.1} parent=55 // pred_check_branch
          %1576 = sbr.rel (%p1574) target = $region92
        $region91: #{tpu_custom_call.1} parent=55 // pred_region
          %v1577 = vld [vmem:[#allocation2] sm:$0xff]
          %v1578 = vld [vmem:[#allocation2 + $0x8] sm:$0xff]
          %v1579 = vld [vmem:[#allocation2 + $0x10] sm:$0xff]
          %v1580 = vld [vmem:[#allocation2 + $0x18] sm:$0xff]
          %v1581 = vsub.f32 %v1577, %v1580
          %v1582 = vadd.f32 %v1579, %v1578
          %vm1583 = vcmp.gt.f32.partialorder %v1581, 0.0
          %v1584 = vmul.f32 %v1581, 0.25
          %v1585 = vsel %vm1583, %v1581, %v1584
          %vm1586 = vcmp.gt.f32.partialorder %v1582, 0.0
          %v1587 = vmul.f32 %v1582, 0.25
          %v1588 = vsel %vm1586, %v1582, %v1587
          %v1589 = vld [vmem:[#allocation11] sm:$0xff]
          %v1590 = vld [vmem:[#allocation11 + $0x8] sm:$0xff]
          %v1591 = vld [vmem:[#allocation11 + $0x10] sm:$0xff]
          %v1592 = vld [vmem:[#allocation11 + $0x18] sm:$0xff]
          %v1593 = vld [vmem:[#allocation11 + $0x20] sm:$0xff]
          %v1594 = vld [vmem:[#allocation11 + $0x28] sm:$0xff]
          %v1595 = vld [vmem:[#allocation11 + $0x30] sm:$0xff]
          %v1596 = vld [vmem:[#allocation11 + $0x38] sm:$0xff]
          %v1597 = vld [vmem:[#allocation11 + $0x40] sm:$0xff]
          %v1598 = vld [vmem:[#allocation11 + $0x48] sm:$0xff]
          %v1599 = vld [vmem:[#allocation11 + $0x50] sm:$0xff]
          %v1600 = vld [vmem:[#allocation11 + $0x58] sm:$0xff]
          %v1601 = vld [vmem:[#allocation11 + $0x60] sm:$0xff]
          %v1602 = vld [vmem:[#allocation11 + $0x68] sm:$0xff]
          %v1603 = vld [vmem:[#allocation11 + $0x70] sm:$0xff]
          %v1604 = vld [vmem:[#allocation11 + $0x78] sm:$0xff]
          %v1605 = vld [vmem:[#allocation11 + $0x80] sm:$0xff]
          %v1606 = vld [vmem:[#allocation11 + $0x88] sm:$0xff]
          %v1607 = vld [vmem:[#allocation11 + $0x90] sm:$0xff]
          %v1608 = vld [vmem:[#allocation11 + $0x98] sm:$0xff]
          %v1609 = vld [vmem:[#allocation11 + $0xa0] sm:$0xff]
          %v1610 = vld [vmem:[#allocation11 + $0xa8] sm:$0xff]
          %v1611 = vld [vmem:[#allocation11 + $0xb0] sm:$0xff]
          %v1612 = vld [vmem:[#allocation11 + $0xb8] sm:$0xff]
          %v1613 = vld [vmem:[#allocation11 + $0xc0] sm:$0xff]
          %v1614 = vld [vmem:[#allocation11 + $0xc8] sm:$0xff]
          %v1615 = vld [vmem:[#allocation11 + $0xd0] sm:$0xff]
          %v1616 = vld [vmem:[#allocation11 + $0xd8] sm:$0xff]
          %v1617 = vld [vmem:[#allocation11 + $0xe0] sm:$0xff]
          %v1618 = vld [vmem:[#allocation11 + $0xe8] sm:$0xff]
          %v1619 = vld [vmem:[#allocation11 + $0xf0] sm:$0xff]
          %v1620 = vld [vmem:[#allocation11 + $0xf8] sm:$0xff]
          %v1621 = vld [vmem:[%s7] sm:$0x3]
          %v1623 = vlaneseq
          %v1624 = vshrl.u32 %v1623, 7
          %v1625 = vsub.s32 0, %v1624
          %v1626 = vrot.slane %v1621, %v1625
          %v1627 = vlaneseq
          %v1628 = vshrl.u32 %v1627, 7
          %v1629 = vsub.s32 1, %v1628
          %v1630 = vrot.slane %v1621, %v1629
          %1633 = vmatprep.subr.mxu0 %v1620
          %1634 = vmatpush1.msra.mxu0 %v1619
          %1635 = vmatprep.subr.mxu0 %v1618
          %1636 = vmatpush1.msra.mxu0 %v1617
          %1637 = vmatprep.subr.mxu0 %v1616
          %1638 = vmatpush1.msra.mxu0 %v1615
          %1639 = vmatprep.subr.mxu0 %v1614
          %1640 = vmatpush1.msra.mxu0 %v1613
          %1641 = vmatprep.subr.mxu0 %v1612
          %1642 = vmatpush1.msra.mxu0 %v1611
          %1643 = vmatprep.subr.mxu0 %v1610
          %1644 = vmatpush1.msra.mxu0 %v1609
          %1645 = vmatprep.subr.mxu0 %v1608
          %1646 = vmatpush1.msra.mxu0 %v1607
          %1647 = vmatprep.subr.mxu0 %v1606
          %1648 = vmatpush1.msra.mxu0 %v1605
          %1649 = vmatprep.subr.mxu0 %v1604
          %1650 = vmatpush1.msra.mxu0 %v1603
          %1651 = vmatprep.subr.mxu0 %v1602
          %1652 = vmatpush1.msra.mxu0 %v1601
          %1653 = vmatprep.subr.mxu0 %v1600
          %1654 = vmatpush1.msra.mxu0 %v1599
          %1655 = vmatprep.subr.mxu0 %v1598
          %1656 = vmatpush1.msra.mxu0 %v1597
          %1657 = vmatprep.subr.mxu0 %v1596
          %1658 = vmatpush1.msra.mxu0 %v1595
          %1659 = vmatprep.subr.mxu0 %v1594
          %1660 = vmatpush1.msra.mxu0 %v1593
          %1661 = vmatprep.subr.mxu0 %v1592
          %1662 = vmatpush1.msra.mxu0 %v1591
          %1663 = vmatprep.subr.mxu0 %v1590
          %1664 = vmatpush1.msra.mxu0 %v1589
          %1665 = vmatprep.subr.mxu0 0.0
          %1666 = vmatpush2.msra.mxu0 0.0
          %1667 = vmatprep.subr.mxu0 0.0
          %1668 = vmatpush2.msra.mxu0 0.0
          %1669 = vmatprep.subr.mxu0 0.0
          %1670 = vmatpush2.msra.mxu0 0.0
          %1671 = vmatprep.subr.mxu0 0.0
          %1672 = vmatpush2.msra.mxu0 0.0
          %1673 = vmatprep.subr.mxu0 0.0
          %1674 = vmatpush2.msra.mxu0 0.0
          %1675 = vmatprep.subr.mxu0 0.0
          %1676 = vmatpush2.msra.mxu0 0.0
          %1677 = vmatprep.subr.mxu0 0.0
          %1678 = vmatpush2.msra.mxu0 0.0
          %1679 = vmatprep.subr.mxu0 0.0
          %1680 = vmatpush2.msra.mxu0 0.0
          %1681 = vmatprep.subr.mxu0 0.0
          %1682 = vmatpush2.msra.mxu0 0.0
          %1683 = vmatprep.subr.mxu0 0.0
          %1684 = vmatpush2.msra.mxu0 0.0
          %1685 = vmatprep.subr.mxu0 0.0
          %1686 = vmatpush2.msra.mxu0 0.0
          %1687 = vmatprep.subr.mxu0 0.0
          %1688 = vmatpush2.msra.mxu0 0.0
          %1689 = vmatprep.subr.mxu0 0.0
          %1690 = vmatpush2.msra.mxu0 0.0
          %1691 = vmatprep.subr.mxu0 0.0
          %1692 = vmatpush2.msra.mxu0 0.0
          %1693 = vmatprep.subr.mxu0 0.0
          %1694 = vmatpush2.msra.mxu0 0.0
          %1695 = vmatprep.subr.mxu0 0.0
          %1696 = vmatpush2.msra.mxu0 0.0
          %1697 = vmatprep.mubr.f32.mxu0 0.0
          %1698 = vmatmul.mubr.f32.gmra.mxu0 %v1585
          %v1699 = vpop.f32.mrf.mxu0
          %v1700 = vadd.f32 %v1626, %v1699
          %v1701 = vpop.f32.mrf.mxu0
          %v1702 = vadd.f32 %v1630, %v1701
          %1703 = vdwg.mxu0
          %v1704 = vld [vmem:[#allocation12] sm:$0xff]
          %v1705 = vld [vmem:[#allocation12 + $0x8] sm:$0xff]
          %v1706 = vld [vmem:[#allocation12 + $0x10] sm:$0xff]
          %v1707 = vld [vmem:[#allocation12 + $0x18] sm:$0xff]
          %v1708 = vld [vmem:[#allocation12 + $0x20] sm:$0xff]
          %v1709 = vld [vmem:[#allocation12 + $0x28] sm:$0xff]
          %v1710 = vld [vmem:[#allocation12 + $0x30] sm:$0xff]
          %v1711 = vld [vmem:[#allocation12 + $0x38] sm:$0xff]
          %v1712 = vld [vmem:[#allocation12 + $0x40] sm:$0xff]
          %v1713 = vld [vmem:[#allocation12 + $0x48] sm:$0xff]
          %v1714 = vld [vmem:[#allocation12 + $0x50] sm:$0xff]
          %v1715 = vld [vmem:[#allocation12 + $0x58] sm:$0xff]
          %v1716 = vld [vmem:[#allocation12 + $0x60] sm:$0xff]
          %v1717 = vld [vmem:[#allocation12 + $0x68] sm:$0xff]
          %v1718 = vld [vmem:[#allocation12 + $0x70] sm:$0xff]
          %v1719 = vld [vmem:[#allocation12 + $0x78] sm:$0xff]
          %v1720 = vld [vmem:[#allocation12 + $0x80] sm:$0xff]
          %v1721 = vld [vmem:[#allocation12 + $0x88] sm:$0xff]
          %v1722 = vld [vmem:[#allocation12 + $0x90] sm:$0xff]
          %v1723 = vld [vmem:[#allocation12 + $0x98] sm:$0xff]
          %v1724 = vld [vmem:[#allocation12 + $0xa0] sm:$0xff]
          %v1725 = vld [vmem:[#allocation12 + $0xa8] sm:$0xff]
          %v1726 = vld [vmem:[#allocation12 + $0xb0] sm:$0xff]
          %v1727 = vld [vmem:[#allocation12 + $0xb8] sm:$0xff]
          %v1728 = vld [vmem:[#allocation12 + $0xc0] sm:$0xff]
          %v1729 = vld [vmem:[#allocation12 + $0xc8] sm:$0xff]
          %v1730 = vld [vmem:[#allocation12 + $0xd0] sm:$0xff]
          %v1731 = vld [vmem:[#allocation12 + $0xd8] sm:$0xff]
          %v1732 = vld [vmem:[#allocation12 + $0xe0] sm:$0xff]
          %v1733 = vld [vmem:[#allocation12 + $0xe8] sm:$0xff]
          %v1734 = vld [vmem:[#allocation12 + $0xf0] sm:$0xff]
          %v1735 = vld [vmem:[#allocation12 + $0xf8] sm:$0xff]
          %v1736 = vld [vmem:[%s8] sm:$0x3]
          %v1738 = vlaneseq
          %v1739 = vshrl.u32 %v1738, 7
          %v1740 = vsub.s32 0, %v1739
          %v1741 = vrot.slane %v1736, %v1740
          %v1742 = vlaneseq
          %v1743 = vshrl.u32 %v1742, 7
          %v1744 = vsub.s32 1, %v1743
          %v1745 = vrot.slane %v1736, %v1744
          %1748 = vmatprep.subr.mxu0 %v1735
          %1749 = vmatpush1.msra.mxu0 %v1734
          %1750 = vmatprep.subr.mxu0 %v1733
          %1751 = vmatpush1.msra.mxu0 %v1732
          %1752 = vmatprep.subr.mxu0 %v1731
          %1753 = vmatpush1.msra.mxu0 %v1730
          %1754 = vmatprep.subr.mxu0 %v1729
          %1755 = vmatpush1.msra.mxu0 %v1728
          %1756 = vmatprep.subr.mxu0 %v1727
          %1757 = vmatpush1.msra.mxu0 %v1726
          %1758 = vmatprep.subr.mxu0 %v1725
          %1759 = vmatpush1.msra.mxu0 %v1724
          %1760 = vmatprep.subr.mxu0 %v1723
          %1761 = vmatpush1.msra.mxu0 %v1722
          %1762 = vmatprep.subr.mxu0 %v1721
          %1763 = vmatpush1.msra.mxu0 %v1720
          %1764 = vmatprep.subr.mxu0 %v1719
          %1765 = vmatpush1.msra.mxu0 %v1718
          %1766 = vmatprep.subr.mxu0 %v1717
          %1767 = vmatpush1.msra.mxu0 %v1716
          %1768 = vmatprep.subr.mxu0 %v1715
          %1769 = vmatpush1.msra.mxu0 %v1714
          %1770 = vmatprep.subr.mxu0 %v1713
          %1771 = vmatpush1.msra.mxu0 %v1712
          %1772 = vmatprep.subr.mxu0 %v1711
          %1773 = vmatpush1.msra.mxu0 %v1710
          %1774 = vmatprep.subr.mxu0 %v1709
          %1775 = vmatpush1.msra.mxu0 %v1708
          %1776 = vmatprep.subr.mxu0 %v1707
          %1777 = vmatpush1.msra.mxu0 %v1706
          %1778 = vmatprep.subr.mxu0 %v1705
          %1779 = vmatpush1.msra.mxu0 %v1704
          %1780 = vmatprep.subr.mxu0 0.0
          %1781 = vmatpush2.msra.mxu0 0.0
          %1782 = vmatprep.subr.mxu0 0.0
          %1783 = vmatpush2.msra.mxu0 0.0
          %1784 = vmatprep.subr.mxu0 0.0
          %1785 = vmatpush2.msra.mxu0 0.0
          %1786 = vmatprep.subr.mxu0 0.0
          %1787 = vmatpush2.msra.mxu0 0.0
          %1788 = vmatprep.subr.mxu0 0.0
          %1789 = vmatpush2.msra.mxu0 0.0
          %1790 = vmatprep.subr.mxu0 0.0
          %1791 = vmatpush2.msra.mxu0 0.0
          %1792 = vmatprep.subr.mxu0 0.0
          %1793 = vmatpush2.msra.mxu0 0.0
          %1794 = vmatprep.subr.mxu0 0.0
          %1795 = vmatpush2.msra.mxu0 0.0
          %1796 = vmatprep.subr.mxu0 0.0
          %1797 = vmatpush2.msra.mxu0 0.0
          %1798 = vmatprep.subr.mxu0 0.0
          %1799 = vmatpush2.msra.mxu0 0.0
          %1800 = vmatprep.subr.mxu0 0.0
          %1801 = vmatpush2.msra.mxu0 0.0
          %1802 = vmatprep.subr.mxu0 0.0
          %1803 = vmatpush2.msra.mxu0 0.0
          %1804 = vmatprep.subr.mxu0 0.0
          %1805 = vmatpush2.msra.mxu0 0.0
          %1806 = vmatprep.subr.mxu0 0.0
          %1807 = vmatpush2.msra.mxu0 0.0
          %1808 = vmatprep.subr.mxu0 0.0
          %1809 = vmatpush2.msra.mxu0 0.0
          %1810 = vmatprep.subr.mxu0 0.0
          %1811 = vmatpush2.msra.mxu0 0.0
          %1812 = vmatprep.mubr.f32.mxu0 0.0
          %1813 = vmatmul.mubr.f32.gmra.mxu0 %v1588
          %v1814 = vpop.f32.mrf.mxu0
          %v1815 = vadd.f32 %v1741, %v1814
          %v1816 = vpop.f32.mrf.mxu0
          %v1817 = vadd.f32 %v1745, %v1816
          %1818 = vdwg.mxu0
          %v1819 = vxor.u32 %v1700, 2147483648
          %v1820 = vxor.u32 %v1702, 2147483648
          %v1821 = vmul.f32 %v1819, 1.442695
          %v1822 = vpow.pop %v1821
          %v1823 = vmul.f32 %v1820, 1.442695
          %v1824 = vpow.pop %v1823
          %v1825 = vadd.f32 %v1822, 1.0
          %v1826 = vadd.f32 %v1824, 1.0
          %v1827 = vrcp.pop %v1825
          %v1828 = vmul.f32 1.0, %v1827
          %v1829 = vrcp.pop %v1826
          %v1830 = vmul.f32 1.0, %v1829
          %1831 = vst [vmem:[#allocation14] sm:$0xff] %v1828
          %1832 = vst [vmem:[#allocation14 + $0x8] sm:$0xff] %v1830
          %v1833 = vxor.u32 %v1815, 2147483648
          %v1834 = vxor.u32 %v1817, 2147483648
          %v1835 = vmul.f32 %v1833, 1.442695
          %v1836 = vpow.pop %v1835
          %v1837 = vmul.f32 %v1834, 1.442695
          %v1838 = vpow.pop %v1837
          %v1839 = vadd.f32 %v1836, 1.0
          %v1840 = vadd.f32 %v1838, 1.0
          %v1841 = vrcp.pop %v1839
          %v1842 = vmul.f32 1.0, %v1841
          %v1843 = vrcp.pop %v1840
          %v1844 = vmul.f32 1.0, %v1843
          %1845 = vst [vmem:[#allocation15] sm:$0xff] %v1842
          %1846 = vst [vmem:[#allocation15 + $0x8] sm:$0xff] %v1844
        $region92: #{tpu_custom_call.1} parent=55 // pred_fallthru
          _
        // Predicated region
        $region93: #{tpu_custom_call.1} parent=55 // pred_check
          %p1847 = pneg %p244
        $region94: #{tpu_custom_call.1} parent=55 // pred_check_branch
          %1849 = sbr.rel (%p1847) target = $region96
        $region95: #{tpu_custom_call.1} parent=55 // pred_region
          %s1851 = ssub.s32 256, 256
          %1852 = vsyncadd [#allocation5], %s1851
          %s1854 = sshll.u32 [#allocation14], 4
          %s1855 = int_to_ptr.vmem [resolvable:$true] %s1854
          %1857 = dma.vmem_to_hbm [thread:$0]  %s1855, 256, %s9, [#allocation5]
        $region96: #{tpu_custom_call.1} parent=55 // pred_fallthru
          _
        // Predicated region
        $region97: #{tpu_custom_call.1} parent=55 // pred_check
          %p1858 = pneg %p265
        $region98: #{tpu_custom_call.1} parent=55 // pred_check_branch
          %1860 = sbr.rel (%p1858) target = $region100
        $region99: #{tpu_custom_call.1} parent=55 // pred_region
          %s1862 = ssub.s32 256, 256
          %1863 = vsyncadd [#allocation16], %s1862
          %s1865 = sshll.u32 [#allocation15], 4
          %s1866 = int_to_ptr.vmem [resolvable:$true] %s1865
          %1868 = dma.vmem_to_hbm [thread:$0]  %s1866, 256, %s10, [#allocation16]
        $region100: #{tpu_custom_call.1} parent=55 // pred_fallthru
          _
        // Predicated region
        $region101: #{tpu_custom_call.1} parent=55 // pred_check
          %p1869 = pneg %p244
        $region102: #{tpu_custom_call.1} parent=55 // pred_check_branch
          %1871 = sbr.rel (%p1869) target = $region104
        $region103: #{tpu_custom_call.1} parent=55 // pred_region
          %1872 = dma.done [#allocation5], 256
        $region104: #{tpu_custom_call.1} parent=55 // pred_fallthru
          _
        // Predicated region
        $region105: #{tpu_custom_call.1} parent=55 // pred_check
          %p1873 = pneg %p265
        $region106: #{tpu_custom_call.1} parent=55 // pred_check_branch
          %1875 = sbr.rel (%p1873) target = $region108
        $region107: #{tpu_custom_call.1} parent=55 // pred_region
          %1876 = dma.done [#allocation16], 256
        $region108: #{tpu_custom_call.1} parent=55 // pred_fallthru
          _
      $region56: #{tpu_custom_call.1} parent=5 // pred_fallthru
        _
      %p1877 = scmp.le.s32.totalorder 2, %s22
      // Predicated region
      $region109: #{tpu_custom_call.1} parent=5 // pred_check
        %p1878 = pneg %p1877
      $region110: #{tpu_custom_call.1} parent=5 // pred_check_branch
        %1880 = sbr.rel (%p1878) target = $region112
      $region111: #{tpu_custom_call.1} parent=5 // pred_region
        %s1881 = ssub.s32 %s22, 2
      $region112: #{tpu_custom_call.1} parent=5 // pred_fallthru
        _
    $region6: #{tpu_custom_call.1} parent=1 // loop_footer
      %s26 = sadd.s32 1, %s22
    $region7: #{tpu_custom_call.1} parent=1 // loop_footer_branch
      %21 = sbr.rel target = $region3
    $region8: #{tpu_custom_call.1} parent=1 // loop_exit
      _
    %1882 = vsyncpa [#allocation4], 1
    %s1883 = scalar_lea.sflag [#allocation4], 1
    %1884 = vsyncpa %s1883, 1
    %1885 = vsyncpa [#allocation7], 1
    %1886 = vsyncpa [#allocation13], 1
    %1887 = vsyncpa [#allocation5], 1
    %s1888 = scalar_lea.sflag [#allocation5], 1
    %1889 = vsyncpa %s1888, 1
    %1890 = vsyncpa [#allocation16], 1

</llo_original>
